<compile_context>
chip_gen: v6e
topology: v6e:2x2x1
jax: 0.10.0
libtpu: 0.0.40
codegen_flags: <defaults>
</compile_context>

<pallas_src>
import jax
import jax.numpy as jnp
from jax.experimental import pallas as pl
from jax.experimental.pallas import tpu as pltpu


def _round_up(n, m):
    return ((n + m - 1) // m) * m


def _is_pre_v6_tpu():
    """True on TPU generations without bf16 VPU/EUP (v5e and earlier)."""
    try:
        kind = jax.devices()[0].device_kind.lower()
    except Exception:
        return False
    return any(tag in kind for tag in ("v2", "v3", "v4", "v5"))


def _elu_f32(x):
    # nn.ELU(alpha=1).  Negative branch expm1(x) built only from Mosaic-safe
    # primitives, with a Taylor fixup near 0 to avoid exp(x)-1 cancellation.
    small = jnp.abs(x) < 1e-3
    em1 = jnp.where(small, x + 0.5 * x * x, jnp.exp(x) - 1.0)
    return jnp.where(x > 0, x, em1)


def _elu_bf16(x):
    # bf16 ELU for v6e/v7x (bf16 VPU + EUP): halves the binding VALU/EUP work.
    # No Taylor fixup: the cancellation it guards against is below bf16
    # resolution of the downstream matmul operand anyway.
    return jnp.where(x > 0, x, jnp.exp(x) - 1.0)


def _make_value_kernel(elu_in_bf16):
    def kernel(x_ref, w1_ref, b1_ref, w2_ref, b2_ref, w3_ref, b3_ref, o_ref):
        # Layer 1: bf16 MXU matmul, f32 accumulation + bias.
        x = x_ref[...].astype(jnp.bfloat16)
        h = jnp.dot(x, w1_ref[...], preferred_element_type=jnp.float32) + b1_ref[...]
        if elu_in_bf16:
            h = _elu_bf16(h.astype(jnp.bfloat16))       # bf16 epilogue (v6e/v7x)
        else:
            h = _elu_f32(h).astype(jnp.bfloat16)        # f32 epilogue (v5e)

        # Layer 2: bf16 MXU matmul, f32 accumulation + bias.
        h = jnp.dot(h, w2_ref[...], preferred_element_type=jnp.float32) + b2_ref[...]
        if elu_in_bf16:
            h = _elu_bf16(h.astype(jnp.bfloat16)).astype(jnp.float32)
        else:
            h = _elu_f32(h)

        # Layer 3 (out_dim = 1): VPU multiply against the (1, h2) weight row +
        # XLU lane reduce, accumulating in f32 (h is f32 here in both branches).
        out = jnp.sum(h * w3_ref[...], axis=-1, keepdims=True) + b3_ref[...]
        o_ref[...] = out.astype(o_ref.dtype)

    return kernel


def prepare_value_params(params):
    """One-time conversion for the kernel: bf16 matmul weights, lane-aligned
    (1, h2) w3 row, f32 biases.  Call once at load time; no-op if already done."""
    w1, b1, w2, b2, w3, b3 = params
    return (w1.astype(jnp.bfloat16), b1.astype(jnp.float32),
            w2.astype(jnp.bfloat16), b2.astype(jnp.float32),
            jnp.asarray(w3, jnp.float32).reshape(1, -1),
            jnp.asarray(b3, jnp.float32).reshape(1, 1))


def _pick_tile(batch, tile_b, align):
    """Full-extent block for small batches; otherwise an aligned tile capped so
    the 'parallel' grid has >= 2 steps (keeps both v7x TensorCores busy)."""
    if batch <= align:
        return batch
    half = _round_up(pl.cdiv(batch, 2), align)
    return _round_up(min(tile_b, half), 8)


def value_forward(x, params, *, tile_b=1024, elu_in_bf16=None):
    """x: (batch, num_obs) float32 (or bfloat16) -> (batch, 1) float32."""
    pre_v6 = _is_pre_v6_tpu()
    if elu_in_bf16 is None:
        elu_in_bf16 = not pre_v6

    w1, b1, w2, b2, w3, b3 = prepare_value_params(params)
    batch, num_obs = x.shape
    h1 = w1.shape[1]
    h2 = w2.shape[1]

    # MXU-friendly alignment: 128-row passes on v5e, 256 on v6e/v7x.
    align = 128 if pre_v6 else 256
    tile = _pick_tile(batch, tile_b, align)
    grid = (pl.cdiv(batch, tile),)          # ragged batch: partial last block is masked

    const = lambda i: (0, 0)                # resident weights/biases every grid step

    out = pl.pallas_call(
        _make_value_kernel(elu_in_bf16),
        out_shape=jax.ShapeDtypeStruct((batch, 1), jnp.float32),
        grid_spec=pltpu.PrefetchScalarGridSpec(
            num_scalar_prefetch=0,
            grid=grid,
            in_specs=[
                pl.BlockSpec((tile, num_obs), lambda i: (i, 0)),   # batch tile
                pl.BlockSpec((num_obs, h1), const),
                pl.BlockSpec((1, h1), const),
                pl.BlockSpec((h1, h2), const),
                pl.BlockSpec((1, h2), const),
                pl.BlockSpec((1, h2), const),
                pl.BlockSpec((1, 1), const),
            ],
            out_specs=pl.BlockSpec((tile, 1), lambda i: (i, 0)),
        ),
        compiler_params=pltpu.CompilerParams(
            dimension_semantics=("parallel",),      # shard batch tiles across v7x TCs
            vmem_limit_bytes=48 * 1024 * 1024,      # covers large tiles; < 64 MiB (v7x)
        ),
    )(x, w1, b1, w2, b2, w3, b3)

    return out


def init_value_params(key, num_obs, hidden_dims=(256, 256)):
    """PyTorch nn.Linear default init: U(-1/sqrt(fan_in), 1/sqrt(fan_in)) for
    weight and bias.  Weights stored as (in_dim, out_dim), f32."""
    dims = [num_obs] + list(hidden_dims) + [1]
    params = []
    for fan_in, fan_out in zip(dims[:-1], dims[1:]):
        key, kw, kb = jax.random.split(key, 3)
        bound = 1.0 / jnp.sqrt(jnp.float32(fan_in))
        w = jax.random.uniform(kw, (fan_in, fan_out), jnp.float32, -bound, bound)
        b = jax.random.uniform(kb, (1, fan_out), jnp.float32, -bound, bound)
        params += [w, b]
    return tuple(params)


def value_forward_ref(x, params, *, match_kernel=True, elu_in_bf16=True):
    """Pure-JAX reference.  match_kernel=True mirrors the kernel's bf16 matmul
    operands + ELU precision; match_kernel=False is the full-f32 PyTorch semantics."""
    w1, b1, w2, b2, w3, b3 = params
    w3 = jnp.asarray(w3, jnp.float32).reshape(1, -1)
    b3 = jnp.asarray(b3, jnp.float32).reshape(1, 1)
    hi = jax.lax.Precision.HIGHEST

    if not match_kernel:
        h = _elu_f32(jnp.dot(x, w1, precision=hi) + b1)
        h = _elu_f32(jnp.dot(h, w2, precision=hi) + b2)
        return jnp.sum(h * w3, axis=-1, keepdims=True) + b3

    bf = lambda a: a.astype(jnp.bfloat16).astype(jnp.float32)
    h = jnp.dot(bf(x), bf(w1), precision=hi) + b1
    h = _elu_bf16(h.astype(jnp.bfloat16)) if elu_in_bf16 else _elu_f32(h)
    h = jnp.dot(bf(h), bf(w2), precision=hi) + b2
    if elu_in_bf16:
        h = _elu_bf16(h.astype(jnp.bfloat16)).astype(jnp.float32)
    else:
        h = _elu_f32(h)
    return jnp.sum(h * w3, axis=-1, keepdims=True) + b3


if __name__ == "__main__":
    key = jax.random.PRNGKey(0)
    key, kx = jax.random.split(key)

    batch = 300          # ragged: exercises the masked partial last block (no wrapper pad)
    num_obs = 32
    hidden_dims = (256, 256)

    params = init_value_params(key, num_obs, hidden_dims)
    x = jax.random.normal(kx, (batch, num_obs), jnp.float32)

    elu_in_bf16 = not _is_pre_v6_tpu()

    # Default tile: 2 "parallel" grid steps (v7x megacore friendly) with ragged tail.
    out_big = jax.block_until_ready(value_forward(x, params, elu_in_bf16=elu_in_bf16))
    # Small tile: 3-step grid, exercises multi-step pipelining + masked last block.
    out_small = jax.block_until_ready(
        value_forward(x, params, tile_b=128, elu_in_bf16=elu_in_bf16))

    ref_matched = value_forward_ref(x, params, match_kernel=True, elu_in_bf16=elu_in_bf16)
    ref_f32 = value_forward_ref(x, params, match_kernel=False)

    assert out_big.shape == (batch, 1)
    assert out_small.shape == (batch, 1)
    assert bool(jnp.all(jnp.isfinite(out_big)))
    assert bool(jnp.all(jnp.isfinite(out_small)))

    # Tight check vs. a reference mirroring the kernel's bf16 rounding points
    # (looser when the EUP computes exp in bf16, which may differ by ~1 ulp).
    tol = 3e-2 if elu_in_bf16 else 2e-3
    assert jnp.allclose(out_big, ref_matched, atol=tol, rtol=tol), \
        float(jnp.max(jnp.abs(out_big - ref_matched)))
    assert jnp.allclose(out_small, ref_matched, atol=tol, rtol=tol), \
        float(jnp.max(jnp.abs(out_small - ref_matched)))
    # Looser sanity check vs. pure-f32 PyTorch module semantics.
    assert jnp.allclose(out_big, ref_f32, atol=1e-1, rtol=1e-1)

    print("KERNEL_OK")
</pallas_src>

<mosaic_0001>
module attributes {stable_mosaic.version = 11 : i64} {
  func.func @kernel(%arg0: i32, %arg1: memref<256x32xf32, #tpu.memory_space<vmem>>, %arg2: memref<32x256xbf16, #tpu.memory_space<vmem>>, %arg3: memref<1x256xf32, #tpu.memory_space<vmem>>, %arg4: memref<256x256xbf16, #tpu.memory_space<vmem>>, %arg5: memref<1x256xf32, #tpu.memory_space<vmem>>, %arg6: memref<1x256xf32, #tpu.memory_space<vmem>>, %arg7: memref<1x1xf32, #tpu.memory_space<vmem>>, %arg8: memref<256x1xf32, #tpu.memory_space<vmem>>) attributes {dimension_semantics = [#tpu.dimension_semantics<parallel>], iteration_bounds = array<i64: 2>, scalar_prefetch = 0 : i64, scratch_operands = 0 : i64, tpu.core_type = #tpu.core_type<tc>, window_params = [{transform_indices = @transform_0, window_bounds = array<i64: 256, 32>}, {pipeline_mode = #tpu.pipeline_mode<synchronous>, transform_indices = @transform_1, window_bounds = array<i64: 32, 256>}, {pipeline_mode = #tpu.pipeline_mode<synchronous>, transform_indices = @transform_2, window_bounds = array<i64: 1, 256>}, {pipeline_mode = #tpu.pipeline_mode<synchronous>, transform_indices = @transform_3, window_bounds = array<i64: 256, 256>}, {pipeline_mode = #tpu.pipeline_mode<synchronous>, transform_indices = @transform_4, window_bounds = array<i64: 1, 256>}, {pipeline_mode = #tpu.pipeline_mode<synchronous>, transform_indices = @transform_5, window_bounds = array<i64: 1, 256>}, {pipeline_mode = #tpu.pipeline_mode<synchronous>, transform_indices = @transform_6, window_bounds = array<i64: 1, 1>}, {transform_indices = @transform_7, window_bounds = array<i64: 256, 1>}]} {
    %c0 = arith.constant 0 : index
    %c0_0 = arith.constant 0 : index
    %0 = vector.load %arg1[%c0, %c0_0] : memref<256x32xf32, #tpu.memory_space<vmem>>, vector<256x32xf32>
    %1 = arith.truncf %0 : vector<256x32xf32> to vector<256x32xbf16>
    %c0_1 = arith.constant 0 : index
    %c0_2 = arith.constant 0 : index
    %2 = vector.load %arg2[%c0_1, %c0_2] : memref<32x256xbf16, #tpu.memory_space<vmem>>, vector<32x256xbf16>
    %cst = arith.constant dense<0.000000e+00> : vector<256x256xf32>
    %3 = tpu.matmul %1, %2, %cst {dimension_numbers = #tpu.dot_dimension_numbers<[1], [0], [0], [1], [0, 0, 1, 1], [], []>} : vector<256x32xbf16>, vector<32x256xbf16>, vector<256x256xf32> -> vector<256x256xf32>
    %c0_3 = arith.constant 0 : index
    %c0_4 = arith.constant 0 : index
    %4 = vector.load %arg3[%c0_3, %c0_4] : memref<1x256xf32, #tpu.memory_space<vmem>>, vector<1x256xf32>
    %5 = vector.broadcast %4 : vector<1x256xf32> to vector<256x256xf32>
    %6 = arith.addf %3, %5 : vector<256x256xf32>
    %7 = arith.truncf %6 : vector<256x256xf32> to vector<256x256xbf16>
    %cst_5 = arith.constant 0.000000e+00 : bf16
    %8 = vector.broadcast %cst_5 : bf16 to vector<256x256xbf16>
    %9 = arith.cmpf ogt, %7, %8 : vector<256x256xbf16>
    %10 = math.exp %7 : vector<256x256xbf16>
    %cst_6 = arith.constant 1.000000e+00 : bf16
    %11 = vector.broadcast %cst_6 : bf16 to vector<256x256xbf16>
    %12 = arith.subf %10, %11 : vector<256x256xbf16>
    %13 = arith.select %9, %7, %12 : vector<256x256xi1>, vector<256x256xbf16>
    %c0_7 = arith.constant 0 : index
    %c0_8 = arith.constant 0 : index
    %14 = vector.load %arg4[%c0_7, %c0_8] : memref<256x256xbf16, #tpu.memory_space<vmem>>, vector<256x256xbf16>
    %cst_9 = arith.constant dense<0.000000e+00> : vector<256x256xf32>
    %15 = tpu.matmul %13, %14, %cst_9 {dimension_numbers = #tpu.dot_dimension_numbers<[1], [0], [0], [1], [0, 0, 1, 1], [], []>} : vector<256x256xbf16>, vector<256x256xbf16>, vector<256x256xf32> -> vector<256x256xf32>
    %c0_10 = arith.constant 0 : index
    %c0_11 = arith.constant 0 : index
    %16 = vector.load %arg5[%c0_10, %c0_11] : memref<1x256xf32, #tpu.memory_space<vmem>>, vector<1x256xf32>
    %17 = vector.broadcast %16 : vector<1x256xf32> to vector<256x256xf32>
    %18 = arith.addf %15, %17 : vector<256x256xf32>
    %19 = arith.truncf %18 : vector<256x256xf32> to vector<256x256xbf16>
    %cst_12 = arith.constant 0.000000e+00 : bf16
    %20 = vector.broadcast %cst_12 : bf16 to vector<256x256xbf16>
    %21 = arith.cmpf ogt, %19, %20 : vector<256x256xbf16>
    %22 = math.exp %19 : vector<256x256xbf16>
    %cst_13 = arith.constant 1.000000e+00 : bf16
    %23 = vector.broadcast %cst_13 : bf16 to vector<256x256xbf16>
    %24 = arith.subf %22, %23 : vector<256x256xbf16>
    %25 = arith.select %21, %19, %24 : vector<256x256xi1>, vector<256x256xbf16>
    %26 = arith.extf %25 : vector<256x256xbf16> to vector<256x256xf32>
    %c0_14 = arith.constant 0 : index
    %c0_15 = arith.constant 0 : index
    %27 = vector.load %arg6[%c0_14, %c0_15] : memref<1x256xf32, #tpu.memory_space<vmem>>, vector<1x256xf32>
    %28 = vector.broadcast %27 : vector<1x256xf32> to vector<256x256xf32>
    %29 = arith.mulf %26, %28 : vector<256x256xf32>
    %cst_16 = arith.constant dense<0.000000e+00> : vector<256xf32>
    %30 = vector.multi_reduction <add>, %29, %cst_16 [1] : vector<256x256xf32> to vector<256xf32>
    %31 = vector.shape_cast %30 : vector<256xf32> to vector<256x1xf32>
    %c0_17 = arith.constant 0 : index
    %c0_18 = arith.constant 0 : index
    %32 = vector.load %arg7[%c0_17, %c0_18] : memref<1x1xf32, #tpu.memory_space<vmem>>, vector<1x1xf32>
    %33 = vector.broadcast %32 : vector<1x1xf32> to vector<256x1xf32>
    %34 = arith.addf %31, %33 : vector<256x1xf32>
    %c0_19 = arith.constant 0 : index
    %c0_20 = arith.constant 0 : index
    %35 = vector.load %arg8[%c0_19, %c0_20] : memref<256x1xf32, #tpu.memory_space<vmem>>, vector<256x1xf32>
    tpu.vector_store %arg8[%c0_19, %c0_20], %34 {strides = array<i32>} : memref<256x1xf32, #tpu.memory_space<vmem>>, vector<256x1xf32>,
    return
  }
  func.func @transform_0(%arg0: i32) -> (i32, i32) {
    %c0_i32 = arith.constant 0 : i32
    %c0_i32_0 = arith.constant 0 : i32
    return %arg0, %c0_i32 : i32, i32
  }
  func.func @transform_1(%arg0: i32) -> (i32, i32) {
    %c0_i32 = arith.constant 0 : i32
    %c0_i32_0 = arith.constant 0 : i32
    %c0_i32_1 = arith.constant 0 : i32
    return %c0_i32, %c0_i32_0 : i32, i32
  }
  func.func @transform_2(%arg0: i32) -> (i32, i32) {
    %c0_i32 = arith.constant 0 : i32
    %c0_i32_0 = arith.constant 0 : i32
    %c0_i32_1 = arith.constant 0 : i32
    return %c0_i32, %c0_i32_0 : i32, i32
  }
  func.func @transform_3(%arg0: i32) -> (i32, i32) {
    %c0_i32 = arith.constant 0 : i32
    %c0_i32_0 = arith.constant 0 : i32
    %c0_i32_1 = arith.constant 0 : i32
    return %c0_i32, %c0_i32_0 : i32, i32
  }
  func.func @transform_4(%arg0: i32) -> (i32, i32) {
    %c0_i32 = arith.constant 0 : i32
    %c0_i32_0 = arith.constant 0 : i32
    %c0_i32_1 = arith.constant 0 : i32
    return %c0_i32, %c0_i32_0 : i32, i32
  }
  func.func @transform_5(%arg0: i32) -> (i32, i32) {
    %c0_i32 = arith.constant 0 : i32
    %c0_i32_0 = arith.constant 0 : i32
    %c0_i32_1 = arith.constant 0 : i32
    return %c0_i32, %c0_i32_0 : i32, i32
  }
  func.func @transform_6(%arg0: i32) -> (i32, i32) {
    %c0_i32 = arith.constant 0 : i32
    %c0_i32_0 = arith.constant 0 : i32
    %c0_i32_1 = arith.constant 0 : i32
    return %c0_i32, %c0_i32_0 : i32, i32
  }
  func.func @transform_7(%arg0: i32) -> (i32, i32) {
    %c0_i32 = arith.constant 0 : i32
    %c0_i32_0 = arith.constant 0 : i32
    return %arg0, %c0_i32 : i32, i32
  }
}

</mosaic_0001>

<llo_original>
// kernel: tpu_custom_call.1
$region0: #{tpu_custom_call.1}
  #allocation0 [shape = 'u32[]', space=smem, size = 0x4, offset = 0x4, fixed_abs, tag = 'smem constant byte address 0x4 - core index']
  #allocation1 [shape = 'u32[144,128]{1,0:T(1,128)}', space=vmem, size = 0x12000, scoped, tag = 'internal scratch']
  #allocation2 [shape = 'f32[1,1]{1,0:T(1,128)S(1)}', space=vmem, size = 0x200, scoped, tag = 'scoped memory for tpu_custom_call.1']
  %s0 = inlined_call_operand.vmem [shape: f32[300,32], index: 0, kind: input, shape index: {}]
  %s1 = inlined_call_operand.vmem [shape: bf16[32,256], index: 1, kind: input, shape index: {}]
  %s2 = inlined_call_operand.vmem [shape: f32[1,256], index: 2, kind: input, shape index: {}]
  %s3 = inlined_call_operand.vmem [shape: bf16[256,256], index: 3, kind: input, shape index: {}]
  %s4 = inlined_call_operand.vmem [shape: f32[1,256], index: 4, kind: input, shape index: {}]
  %s5 = inlined_call_operand.vmem [shape: f32[1,256], index: 5, kind: input, shape index: {}]
  %s6 = inlined_call_operand.<no memory space> [shape: f32[1,1], index: 6, kind: input, shape index: {}]
  %s7 = inlined_call_operand.vmem [shape: f32[300,1], index: 7, kind: output, shape index: {}]
  %s8 = sld [smem:[#allocation0]]
  $region109: #{tpu_custom_call.1} parent=0
    _
  %s10 = ssub.s32 1, %s8
  %s11 = scalar_select 0, %s10, %s8
  %v12 = vstv %s6
  %13 = vst [vmem:[#allocation2] sm:$0x1] %v12
  $region1: #{tpu_custom_call.1} parent=0
    #allocation3 [shape = 'u8[262144]{0}', space=vmem, size = 0x40000, scoped, tag = 'output window, operand 0']
    loop: start=0, step=1, limit=4
    $region2: #{tpu_custom_call.1} parent=1 // loop_pre_header
      _
    $region3: #{tpu_custom_call.1} parent=1 // loop_header
      %s15 = sphi 0, %s19
      %p16 = scmp.ge.s32.totalorder %s15, 4
      %s25 = sphi 0, %s27
      %s28 = sphi 0, %s25
      %s29 = sphi 0, %s28
      %s45 = sphi 0, %s29
      %s49 = sphi 0, %s49
      %s51 = sphi 0, %s49
      %s52 = sphi 0, %s51
      %s66 = sphi 0, %s52
      %s70 = sphi 0, %s70
      %s72 = sphi 0, %s70
      %s73 = sphi 0, %s72
      %s87 = sphi 0, %s73
      %s91 = sphi 0, %s91
      %s93 = sphi 0, %s91
      %s94 = sphi 0, %s93
      %s108 = sphi 0, %s94
      %s112 = sphi 0, %s112
      %s114 = sphi 0, %s112
      %s115 = sphi 0, %s114
      %s129 = sphi 0, %s115
      %s133 = sphi 0, %s133
      %s135 = sphi 0, %s133
      %s136 = sphi 0, %s135
      %s150 = sphi 0, %s136
      %s154 = sphi 0, %s154
      %s156 = sphi 0, %s154
      %s157 = sphi 0, %s156
      %s171 = sphi 0, %s157
      %s177 = sphi 0, %s179
      %s180 = sphi 0, %s177
      %s181 = sphi 0, %s180
      %s197 = sphi 0, %s181
    $region4: #{tpu_custom_call.1} parent=1 // loop_header_branch
      %18 = sbr.rel (%p16) target = $region8
    $region5: #{tpu_custom_call.1} parent=1 // loop_body
      %s20 = ssub.s32 %s15, 1
      %s21 = ssub.s32 %s15, 2
      %s22 = sadd.s32 %s15, 1
      %s23 = ssub.s32 %s15, %s22
      %p24 = scmp.eq.s32.totalorder %s23, 0
      %s26 = sadd.s32 %s25, 1
      %s27 = scalar_select %p24, %s25, %s26
      %p30 = pneg %p24
      %p31 = scmp.eq.s32.totalorder %s15, 1
      %p32 = por %p30, %p31
      %p33 = scmp.ne.s32.totalorder %s25, %s28
      %p34 = scmp.eq.s32.totalorder %s15, 0
      %p35 = por %p33, %p34
      %p36 = scmp.ne.s32.totalorder %s25, %s28
      %p37 = scmp.eq.s32.totalorder %s20, 1
      %p38 = por %p36, %p37
      %p39 = scmp.ne.s32.totalorder %s28, %s29
      %p40 = scmp.eq.s32.totalorder %s20, 0
      %p41 = por %p39, %p40
      %p42 = scmp.ne.s32.totalorder %s28, %s29
      %p43 = scmp.eq.s32.totalorder %s21, 1
      %p44 = por %p42, %p43
      %p46 = scmp.ne.s32.totalorder %s29, %s45
      %p47 = scmp.eq.s32.totalorder %s21, 0
      %p48 = por %p46, %p47
      %s50 = sadd.s32 %s49, 1
      %p53 = scmp.eq.s32.totalorder %s15, 1
      %p54 = scmp.ne.s32.totalorder %s49, %s51
      %p55 = scmp.eq.s32.totalorder %s15, 0
      %p56 = por %p54, %p55
      %p57 = scmp.ne.s32.totalorder %s49, %s51
      %p58 = scmp.eq.s32.totalorder %s20, 1
      %p59 = por %p57, %p58
      %p60 = scmp.ne.s32.totalorder %s51, %s52
      %p61 = scmp.eq.s32.totalorder %s20, 0
      %p62 = por %p60, %p61
      %p63 = scmp.ne.s32.totalorder %s51, %s52
      %p64 = scmp.eq.s32.totalorder %s21, 1
      %p65 = por %p63, %p64
      %p67 = scmp.ne.s32.totalorder %s52, %s66
      %p68 = scmp.eq.s32.totalorder %s21, 0
      %p69 = por %p67, %p68
      %s71 = sadd.s32 %s70, 1
      %p74 = scmp.eq.s32.totalorder %s15, 1
      %p75 = scmp.ne.s32.totalorder %s70, %s72
      %p76 = scmp.eq.s32.totalorder %s15, 0
      %p77 = por %p75, %p76
      %p78 = scmp.ne.s32.totalorder %s70, %s72
      %p79 = scmp.eq.s32.totalorder %s20, 1
      %p80 = por %p78, %p79
      %p81 = scmp.ne.s32.totalorder %s72, %s73
      %p82 = scmp.eq.s32.totalorder %s20, 0
      %p83 = por %p81, %p82
      %p84 = scmp.ne.s32.totalorder %s72, %s73
      %p85 = scmp.eq.s32.totalorder %s21, 1
      %p86 = por %p84, %p85
      %p88 = scmp.ne.s32.totalorder %s73, %s87
      %p89 = scmp.eq.s32.totalorder %s21, 0
      %p90 = por %p88, %p89
      %s92 = sadd.s32 %s91, 1
      %p95 = scmp.eq.s32.totalorder %s15, 1
      %p96 = scmp.ne.s32.totalorder %s91, %s93
      %p97 = scmp.eq.s32.totalorder %s15, 0
      %p98 = por %p96, %p97
      %p99 = scmp.ne.s32.totalorder %s91, %s93
      %p100 = scmp.eq.s32.totalorder %s20, 1
      %p101 = por %p99, %p100
      %p102 = scmp.ne.s32.totalorder %s93, %s94
      %p103 = scmp.eq.s32.totalorder %s20, 0
      %p104 = por %p102, %p103
      %p105 = scmp.ne.s32.totalorder %s93, %s94
      %p106 = scmp.eq.s32.totalorder %s21, 1
      %p107 = por %p105, %p106
      %p109 = scmp.ne.s32.totalorder %s94, %s108
      %p110 = scmp.eq.s32.totalorder %s21, 0
      %p111 = por %p109, %p110
      %s113 = sadd.s32 %s112, 1
      %p116 = scmp.eq.s32.totalorder %s15, 1
      %p117 = scmp.ne.s32.totalorder %s112, %s114
      %p118 = scmp.eq.s32.totalorder %s15, 0
      %p119 = por %p117, %p118
      %p120 = scmp.ne.s32.totalorder %s112, %s114
      %p121 = scmp.eq.s32.totalorder %s20, 1
      %p122 = por %p120, %p121
      %p123 = scmp.ne.s32.totalorder %s114, %s115
      %p124 = scmp.eq.s32.totalorder %s20, 0
      %p125 = por %p123, %p124
      %p126 = scmp.ne.s32.totalorder %s114, %s115
      %p127 = scmp.eq.s32.totalorder %s21, 1
      %p128 = por %p126, %p127
      %p130 = scmp.ne.s32.totalorder %s115, %s129
      %p131 = scmp.eq.s32.totalorder %s21, 0
      %p132 = por %p130, %p131
      %s134 = sadd.s32 %s133, 1
      %p137 = scmp.eq.s32.totalorder %s15, 1
      %p138 = scmp.ne.s32.totalorder %s133, %s135
      %p139 = scmp.eq.s32.totalorder %s15, 0
      %p140 = por %p138, %p139
      %p141 = scmp.ne.s32.totalorder %s133, %s135
      %p142 = scmp.eq.s32.totalorder %s20, 1
      %p143 = por %p141, %p142
      %p144 = scmp.ne.s32.totalorder %s135, %s136
      %p145 = scmp.eq.s32.totalorder %s20, 0
      %p146 = por %p144, %p145
      %p147 = scmp.ne.s32.totalorder %s135, %s136
      %p148 = scmp.eq.s32.totalorder %s21, 1
      %p149 = por %p147, %p148
      %p151 = scmp.ne.s32.totalorder %s136, %s150
      %p152 = scmp.eq.s32.totalorder %s21, 0
      %p153 = por %p151, %p152
      %s155 = sadd.s32 %s154, 1
      %p158 = scmp.eq.s32.totalorder %s15, 1
      %p159 = scmp.ne.s32.totalorder %s154, %s156
      %p160 = scmp.eq.s32.totalorder %s15, 0
      %p161 = por %p159, %p160
      %p162 = scmp.ne.s32.totalorder %s154, %s156
      %p163 = scmp.eq.s32.totalorder %s20, 1
      %p164 = por %p162, %p163
      %p165 = scmp.ne.s32.totalorder %s156, %s157
      %p166 = scmp.eq.s32.totalorder %s20, 0
      %p167 = por %p165, %p166
      %p168 = scmp.ne.s32.totalorder %s156, %s157
      %p169 = scmp.eq.s32.totalorder %s21, 1
      %p170 = por %p168, %p169
      %p172 = scmp.ne.s32.totalorder %s157, %s171
      %p173 = scmp.eq.s32.totalorder %s21, 0
      %p174 = por %p172, %p173
      %s175 = ssub.s32 %s15, %s22
      %p176 = scmp.eq.s32.totalorder %s175, 0
      %s178 = sadd.s32 %s177, 1
      %s179 = scalar_select %p176, %s177, %s178
      %p182 = pneg %p176
      %p183 = scmp.eq.s32.totalorder %s15, 1
      %p184 = por %p182, %p183
      %p185 = scmp.ne.s32.totalorder %s177, %s180
      %p186 = scmp.eq.s32.totalorder %s15, 0
      %p187 = por %p185, %p186
      %p188 = scmp.ne.s32.totalorder %s177, %s180
      %p189 = scmp.eq.s32.totalorder %s20, 1
      %p190 = por %p188, %p189
      %p191 = scmp.ne.s32.totalorder %s180, %s181
      %p192 = scmp.eq.s32.totalorder %s20, 0
      %p193 = por %p191, %p192
      %p194 = scmp.ne.s32.totalorder %s180, %s181
      %p195 = scmp.eq.s32.totalorder %s21, 1
      %p196 = por %p194, %p195
      %p198 = scmp.ne.s32.totalorder %s181, %s197
      %p199 = scmp.eq.s32.totalorder %s21, 0
      %p200 = por %p198, %p199
      %p201 = scmp.le.s32.totalorder 1, %s15
      %p202 = scmp.lt.s32.totalorder %s15, 3
      %p203 = pnand %p201, %p202
      %p204 = pneg %p203
      // Predicated region
      $region9: #{tpu_custom_call.1} parent=5 // pred_check
        _
      $region10: #{tpu_custom_call.1} parent=5 // pred_check_branch
        %206 = sbr.rel (%p203) target = $region12
      $region11: #{tpu_custom_call.1} parent=5 // pred_region
        %s207 = ssub.s32 %s15, 1
        // Predicated region
        $region13: #{tpu_custom_call.1} parent=11 // pred_check
          %p208 = pneg %p62
        $region14: #{tpu_custom_call.1} parent=11 // pred_check_branch
          %210 = sbr.rel (%p208) target = $region16
        $region15: #{tpu_custom_call.1} parent=11 // pred_region
          _
        $region16: #{tpu_custom_call.1} parent=11 // pred_fallthru
          _
        // Predicated region
        $region17: #{tpu_custom_call.1} parent=11 // pred_check
          %p211 = pneg %p83
        $region18: #{tpu_custom_call.1} parent=11 // pred_check_branch
          %213 = sbr.rel (%p211) target = $region20
        $region19: #{tpu_custom_call.1} parent=11 // pred_region
          _
        $region20: #{tpu_custom_call.1} parent=11 // pred_fallthru
          _
        // Predicated region
        $region21: #{tpu_custom_call.1} parent=11 // pred_check
          %p214 = pneg %p104
        $region22: #{tpu_custom_call.1} parent=11 // pred_check_branch
          %216 = sbr.rel (%p214) target = $region24
        $region23: #{tpu_custom_call.1} parent=11 // pred_region
          _
        $region24: #{tpu_custom_call.1} parent=11 // pred_fallthru
          _
        // Predicated region
        $region25: #{tpu_custom_call.1} parent=11 // pred_check
          %p217 = pneg %p125
        $region26: #{tpu_custom_call.1} parent=11 // pred_check_branch
          %219 = sbr.rel (%p217) target = $region28
        $region27: #{tpu_custom_call.1} parent=11 // pred_region
          _
        $region28: #{tpu_custom_call.1} parent=11 // pred_fallthru
          _
        // Predicated region
        $region29: #{tpu_custom_call.1} parent=11 // pred_check
          %p220 = pneg %p146
        $region30: #{tpu_custom_call.1} parent=11 // pred_check_branch
          %222 = sbr.rel (%p220) target = $region32
        $region31: #{tpu_custom_call.1} parent=11 // pred_region
          _
        $region32: #{tpu_custom_call.1} parent=11 // pred_fallthru
          _
        // Predicated region
        $region33: #{tpu_custom_call.1} parent=11 // pred_check
          %p223 = pneg %p167
        $region34: #{tpu_custom_call.1} parent=11 // pred_check_branch
          %225 = sbr.rel (%p223) target = $region36
        $region35: #{tpu_custom_call.1} parent=11 // pred_region
          _
        $region36: #{tpu_custom_call.1} parent=11 // pred_fallthru
          _
      $region12: #{tpu_custom_call.1} parent=5 // pred_fallthru
        _
      %p226 = scmp.lt.s32.totalorder %s15, 2
      // Predicated region
      $region37: #{tpu_custom_call.1} parent=5 // pred_check
        %p227 = pneg %p226
      $region38: #{tpu_custom_call.1} parent=5 // pred_check_branch
        %229 = sbr.rel (%p227) target = $region40
      $region39: #{tpu_custom_call.1} parent=5 // pred_region
        // Predicated region
        $region41: #{tpu_custom_call.1} parent=39 // pred_check
          %p230 = pneg %p35
        $region42: #{tpu_custom_call.1} parent=39 // pred_check_branch
          %232 = sbr.rel (%p230) target = $region44
        $region43: #{tpu_custom_call.1} parent=39 // pred_region
          %s233 = smul.u32 32, %s15
          %s234 = ssub.s32 38, %s233
          %p235 = scmp.lt.s32.totalorder %s234, 32
          %s236 = scalar_select %p235, %s234, 32
          %s237 = smul.u32 128, %s236
          %p238 = scmp.lt.s32.totalorder %s233, 37
          %s239 = scalar_select %p238, %s233, 37
          %s240 = smul.addr %s239, 8
          %s241 = scalar_lea.vmem %s0, %s240
          %s242 = smul.u32 32, %s15
          %s243 = ssub.s32 38, %s242
          %p244 = scmp.lt.s32.totalorder %s243, 32
          %s245 = scalar_select %p244, %s243, 32
          %s246 = smul.u32 128, %s245
        $region44: #{tpu_custom_call.1} parent=39 // pred_fallthru
          _
      $region40: #{tpu_custom_call.1} parent=5 // pred_fallthru
        _
      %p247 = scmp.le.s32.totalorder 1, %s15
      %p248 = scmp.lt.s32.totalorder %s15, 3
      %p249 = pnand %p247, %p248
      %p250 = pneg %p249
      // Predicated region
      $region45: #{tpu_custom_call.1} parent=5 // pred_check
        _
      $region46: #{tpu_custom_call.1} parent=5 // pred_check_branch
        %252 = sbr.rel (%p249) target = $region48
      $region47: #{tpu_custom_call.1} parent=5 // pred_region
        %s253 = ssub.s32 %s15, 1
        %s254 = smul.u32 32, %s20
        %s255 = ssub.s32 38, %s254
        %p256 = scmp.lt.s32.totalorder %s255, 32
        %s257 = scalar_select %p256, %s255, 32
        %s258 = smul.u32 128, %s257
        %p259 = scmp.lt.s32.totalorder %s254, 37
        %s260 = scalar_select %p259, %s254, 37
        %s261 = smul.addr %s260, 8
        %s262 = scalar_lea.vmem %s0, %s261
        %p263 = pneg %p41
        %p264 = pneg %p38
        %p265 = pneg %p62
        %p266 = pneg %p59
        %p267 = pneg %p83
        %p268 = pneg %p80
        %p269 = pneg %p104
        %p270 = pneg %p101
        %p271 = pneg %p125
        %p272 = pneg %p122
        %p273 = pneg %p146
        %p274 = pneg %p143
        %p275 = pneg %p167
        %p276 = pneg %p164
        %p277 = pneg %p193
        %p278 = pneg %p190
        %s279 = sand.u32 %s180, 1
        %s280 = sand.u32 %s180, 1
        %s281 = smul.addr %s280, 256
        %s282 = scalar_lea.vmem [#allocation3], %s281
        %s283 = smul.u32 32, %s20
        %s284 = ssub.s32 38, %s283
        %p285 = scmp.lt.s32.totalorder %s284, 32
        %s286 = scalar_select %p285, %s284, 32
        %s287 = smul.u32 128, %s286
        %p288 = scmp.lt.s32.totalorder %s283, 37
        %s289 = scalar_select %p288, %s283, 37
        %s290 = smul.addr %s289, 8
        %s291 = scalar_lea.vmem %s0, %s290
        %s292 = smul.u32 32, %s20
        %s293 = ssub.s32 38, %s292
        %p294 = scmp.lt.s32.totalorder %s293, 32
        %s295 = scalar_select %p294, %s293, 32
        %s296 = smul.u32 128, %s295
        %s297 = smul.u32 32, %s20
        %s298 = ssub.s32 38, %s297
        %p299 = scmp.lt.s32.totalorder %s298, 32
        %s300 = scalar_select %p299, %s298, 32
        %s301 = smul.u32 128, %s300
        %v304 = vld [vmem:[%s291] sm:$0xff]
        %v305 = vld [vmem:[%s291 + $0x8] sm:$0xff]
        %v306 = vld [vmem:[%s291 + $0x10] sm:$0xff]
        %v307 = vld [vmem:[%s291 + $0x18] sm:$0xff]
        %v308 = vld [vmem:[%s291 + $0x20] sm:$0xff]
        %v309 = vld [vmem:[%s291 + $0x28] sm:$0xff]
        %v310 = vld [vmem:[%s291 + $0x30] sm:$0xff]
        %v311 = vld [vmem:[%s291 + $0x38] sm:$0xff]
        %v312 = vld [vmem:[%s291 + $0x40] sm:$0xff]
        %v313 = vld [vmem:[%s291 + $0x48] sm:$0xff]
        %v314 = vld [vmem:[%s291 + $0x50] sm:$0xff]
        %v315 = vld [vmem:[%s291 + $0x58] sm:$0xff]
        %v316 = vld [vmem:[%s291 + $0x60] sm:$0xff]
        %v317 = vld [vmem:[%s291 + $0x68] sm:$0xff]
        %v318 = vld [vmem:[%s291 + $0x70] sm:$0xff]
        %v319 = vld [vmem:[%s291 + $0x78] sm:$0xff]
        %v320 = vld [vmem:[%s291 + $0x80] sm:$0xff]
        %v321 = vld [vmem:[%s291 + $0x88] sm:$0xff]
        %v322 = vld [vmem:[%s291 + $0x90] sm:$0xff]
        %v323 = vld [vmem:[%s291 + $0x98] sm:$0xff]
        %v324 = vld [vmem:[%s291 + $0xa0] sm:$0xff]
        %v325 = vld [vmem:[%s291 + $0xa8] sm:$0xff]
        %v326 = vld [vmem:[%s291 + $0xb0] sm:$0xff]
        %v327 = vld [vmem:[%s291 + $0xb8] sm:$0xff]
        %v328 = vld [vmem:[%s291 + $0xc0] sm:$0xff]
        %v329 = vld [vmem:[%s291 + $0xc8] sm:$0xff]
        %v330 = vld [vmem:[%s291 + $0xd0] sm:$0xff]
        %v331 = vld [vmem:[%s291 + $0xd8] sm:$0xff]
        %v332 = vld [vmem:[%s291 + $0xe0] sm:$0xff]
        %v333 = vld [vmem:[%s291 + $0xe8] sm:$0xff]
        %v334 = vld [vmem:[%s291 + $0xf0] sm:$0xff]
        %v335 = vld [vmem:[%s291 + $0xf8] sm:$0xff]
        %v336 = vpack.c.bf16 %v305, %v304
        %v337 = vpack.c.bf16 %v307, %v306
        %v338 = vpack.c.bf16 %v309, %v308
        %v339 = vpack.c.bf16 %v311, %v310
        %v340 = vpack.c.bf16 %v313, %v312
        %v341 = vpack.c.bf16 %v315, %v314
        %v342 = vpack.c.bf16 %v317, %v316
        %v343 = vpack.c.bf16 %v319, %v318
        %v344 = vpack.c.bf16 %v321, %v320
        %v345 = vpack.c.bf16 %v323, %v322
        %v346 = vpack.c.bf16 %v325, %v324
        %v347 = vpack.c.bf16 %v327, %v326
        %v348 = vpack.c.bf16 %v329, %v328
        %v349 = vpack.c.bf16 %v331, %v330
        %v350 = vpack.c.bf16 %v333, %v332
        %v351 = vpack.c.bf16 %v335, %v334
        %v352 = vld [vmem:[%s1] sm:$0xff]
        %v353 = vld [vmem:[%s1 + $0x8] sm:$0xff]
        %v354 = vld [vmem:[%s1 + $0x10] sm:$0xff]
        %v355 = vld [vmem:[%s1 + $0x18] sm:$0xff]
        %v356 = vld [vmem:[%s2] sm:$0x3]
        %v358 = vlaneseq
        %v359 = vshrl.u32 %v358, 7
        %v360 = vsub.s32 0, %v359
        %v361 = vrot.slane %v356, %v360
        %v362 = vlaneseq
        %v363 = vshrl.u32 %v362, 7
        %v364 = vsub.s32 1, %v363
        %v365 = vrot.slane %v356, %v364
        %v372 = vunpack.c.l.b16 %v352
        %v373 = vunpack.c.h.b16 %v352
        %v374 = vunpack.c.l.b16 %v353
        %v375 = vunpack.c.h.b16 %v353
        %v376 = vunpack.c.l.b16 %v354
        %v377 = vunpack.c.h.b16 %v354
        %v378 = vunpack.c.l.b16 %v355
        %v379 = vunpack.c.h.b16 %v355
        %v380 = vpack.c.b16 %v374, %v372
        %v381 = vpack.c.b16 %v375, %v373
        %v382 = vpack.c.b16 %v378, %v376
        %v383 = vpack.c.b16 %v379, %v377
        %vm388 = vcmask 261120
        %v390 = vsel %vm388, %v336, 0
        %v393 = vsel %vm388, %v337, 0
        %v396 = vsel %vm388, %v338, 0
        %v399 = vsel %vm388, %v339, 0
        %v402 = vsel %vm388, %v340, 0
        %v405 = vsel %vm388, %v341, 0
        %v408 = vsel %vm388, %v342, 0
        %v411 = vsel %vm388, %v343, 0
        %v414 = vsel %vm388, %v344, 0
        %v417 = vsel %vm388, %v345, 0
        %v420 = vsel %vm388, %v346, 0
        %v423 = vsel %vm388, %v347, 0
        %v426 = vsel %vm388, %v348, 0
        %v429 = vsel %vm388, %v349, 0
        %v432 = vsel %vm388, %v350, 0
        %v435 = vsel %vm388, %v351, 0
        %437 = vmatprep.subr.bf16.mxu0 0
        %438 = vmatpush1.bf16.msra.mxu0 0
        %439 = vmatprep.subr.bf16.mxu0 0
        %440 = vmatpush1.bf16.msra.mxu0 0
        %441 = vmatprep.subr.bf16.mxu0 0
        %442 = vmatpush1.bf16.msra.mxu0 0
        %443 = vmatprep.subr.bf16.mxu0 0
        %444 = vmatpush1.bf16.msra.mxu0 0
        %445 = vmatprep.subr.bf16.mxu0 0
        %446 = vmatpush1.bf16.msra.mxu0 0
        %447 = vmatprep.subr.bf16.mxu0 0
        %448 = vmatpush1.bf16.msra.mxu0 0
        %449 = vmatprep.subr.bf16.mxu0 %v383
        %450 = vmatpush1.bf16.msra.mxu0 %v382
        %451 = vmatprep.subr.bf16.mxu0 %v381
        %452 = vmatpush1.bf16.msra.mxu0 %v380
        %453 = vmatprep.subr.bf16.mxu0 0
        %454 = vmatpush2.bf16.msra.mxu0 0
        %455 = vmatprep.subr.bf16.mxu0 0
        %456 = vmatpush2.bf16.msra.mxu0 0
        %457 = vmatprep.subr.bf16.mxu0 0
        %458 = vmatpush2.bf16.msra.mxu0 0
        %459 = vmatprep.subr.bf16.mxu0 0
        %460 = vmatpush2.bf16.msra.mxu0 0
        %461 = vmatprep.subr.bf16.mxu0 0
        %462 = vmatpush2.bf16.msra.mxu0 0
        %463 = vmatprep.subr.bf16.mxu0 0
        %464 = vmatpush2.bf16.msra.mxu0 0
        %465 = vmatprep.subr.bf16.mxu0 0
        %466 = vmatpush2.bf16.msra.mxu0 0
        %467 = vmatprep.subr.bf16.mxu0 0
        %468 = vmatpush2.bf16.msra.mxu0 0
        %469 = vmatprep.mubr.bf16.mxu0 0
        %470 = vmatmul.mubr.bf16.gmra.mxu0 %v390
        %v471 = vpop.f32.mrf.mxu0
        %v472 = vadd.f32 %v361, %v471
        %v473 = vpop.f32.mrf.mxu0
        %v474 = vadd.f32 %v365, %v473
        %v475 = vpop.f32.mrf.mxu0
        %v476 = vadd.f32 %v361, %v475
        %v477 = vpop.f32.mrf.mxu0
        %v478 = vadd.f32 %v365, %v477
        %479 = vmatprep.mubr.bf16.mxu0 0
        %480 = vmatmul.mubr.bf16.gmra.mxu0 %v393
        %v481 = vpop.f32.mrf.mxu0
        %v482 = vadd.f32 %v361, %v481
        %v483 = vpop.f32.mrf.mxu0
        %v484 = vadd.f32 %v365, %v483
        %v485 = vpop.f32.mrf.mxu0
        %v486 = vadd.f32 %v361, %v485
        %v487 = vpop.f32.mrf.mxu0
        %v488 = vadd.f32 %v365, %v487
        %489 = vmatprep.mubr.bf16.mxu0 0
        %490 = vmatmul.mubr.bf16.gmra.mxu0 %v396
        %v491 = vpop.f32.mrf.mxu0
        %v492 = vadd.f32 %v361, %v491
        %v493 = vpop.f32.mrf.mxu0
        %v494 = vadd.f32 %v365, %v493
        %v495 = vpop.f32.mrf.mxu0
        %v496 = vadd.f32 %v361, %v495
        %v497 = vpop.f32.mrf.mxu0
        %v498 = vadd.f32 %v365, %v497
        %499 = vmatprep.mubr.bf16.mxu0 0
        %500 = vmatmul.mubr.bf16.gmra.mxu0 %v399
        %v501 = vpop.f32.mrf.mxu0
        %v502 = vadd.f32 %v361, %v501
        %v503 = vpop.f32.mrf.mxu0
        %v504 = vadd.f32 %v365, %v503
        %v505 = vpop.f32.mrf.mxu0
        %v506 = vadd.f32 %v361, %v505
        %v507 = vpop.f32.mrf.mxu0
        %v508 = vadd.f32 %v365, %v507
        %509 = vmatprep.mubr.bf16.mxu0 0
        %510 = vmatmul.mubr.bf16.gmra.mxu0 %v402
        %v511 = vpop.f32.mrf.mxu0
        %v512 = vadd.f32 %v361, %v511
        %v513 = vpop.f32.mrf.mxu0
        %v514 = vadd.f32 %v365, %v513
        %v515 = vpop.f32.mrf.mxu0
        %v516 = vadd.f32 %v361, %v515
        %v517 = vpop.f32.mrf.mxu0
        %v518 = vadd.f32 %v365, %v517
        %519 = vmatprep.mubr.bf16.mxu0 0
        %520 = vmatmul.mubr.bf16.gmra.mxu0 %v405
        %v521 = vpop.f32.mrf.mxu0
        %v522 = vadd.f32 %v361, %v521
        %v523 = vpop.f32.mrf.mxu0
        %v524 = vadd.f32 %v365, %v523
        %v525 = vpop.f32.mrf.mxu0
        %v526 = vadd.f32 %v361, %v525
        %v527 = vpop.f32.mrf.mxu0
        %v528 = vadd.f32 %v365, %v527
        %529 = vmatprep.mubr.bf16.mxu0 0
        %530 = vmatmul.mubr.bf16.gmra.mxu0 %v408
        %v531 = vpop.f32.mrf.mxu0
        %v532 = vadd.f32 %v361, %v531
        %v533 = vpop.f32.mrf.mxu0
        %v534 = vadd.f32 %v365, %v533
        %v535 = vpop.f32.mrf.mxu0
        %v536 = vadd.f32 %v361, %v535
        %v537 = vpop.f32.mrf.mxu0
        %v538 = vadd.f32 %v365, %v537
        %539 = vmatprep.mubr.bf16.mxu0 0
        %540 = vmatmul.mubr.bf16.gmra.mxu0 %v411
        %v541 = vpop.f32.mrf.mxu0
        %v542 = vadd.f32 %v361, %v541
        %v543 = vpop.f32.mrf.mxu0
        %v544 = vadd.f32 %v365, %v543
        %v545 = vpop.f32.mrf.mxu0
        %v546 = vadd.f32 %v361, %v545
        %v547 = vpop.f32.mrf.mxu0
        %v548 = vadd.f32 %v365, %v547
        %549 = vmatprep.mubr.bf16.mxu0 0
        %550 = vmatmul.mubr.bf16.gmra.mxu0 %v414
        %v551 = vpop.f32.mrf.mxu0
        %v552 = vadd.f32 %v361, %v551
        %v553 = vpop.f32.mrf.mxu0
        %v554 = vadd.f32 %v365, %v553
        %v555 = vpop.f32.mrf.mxu0
        %v556 = vadd.f32 %v361, %v555
        %v557 = vpop.f32.mrf.mxu0
        %v558 = vadd.f32 %v365, %v557
        %559 = vmatprep.mubr.bf16.mxu0 0
        %560 = vmatmul.mubr.bf16.gmra.mxu0 %v417
        %v561 = vpop.f32.mrf.mxu0
        %v562 = vadd.f32 %v361, %v561
        %v563 = vpop.f32.mrf.mxu0
        %v564 = vadd.f32 %v365, %v563
        %v565 = vpop.f32.mrf.mxu0
        %v566 = vadd.f32 %v361, %v565
        %v567 = vpop.f32.mrf.mxu0
        %v568 = vadd.f32 %v365, %v567
        %569 = vmatprep.mubr.bf16.mxu0 0
        %570 = vmatmul.mubr.bf16.gmra.mxu0 %v420
        %v571 = vpop.f32.mrf.mxu0
        %v572 = vadd.f32 %v361, %v571
        %v573 = vpop.f32.mrf.mxu0
        %v574 = vadd.f32 %v365, %v573
        %v575 = vpop.f32.mrf.mxu0
        %v576 = vadd.f32 %v361, %v575
        %v577 = vpop.f32.mrf.mxu0
        %v578 = vadd.f32 %v365, %v577
        %579 = vmatprep.mubr.bf16.mxu0 0
        %580 = vmatmul.mubr.bf16.gmra.mxu0 %v423
        %v581 = vpop.f32.mrf.mxu0
        %v582 = vadd.f32 %v361, %v581
        %v583 = vpop.f32.mrf.mxu0
        %v584 = vadd.f32 %v365, %v583
        %v585 = vpop.f32.mrf.mxu0
        %v586 = vadd.f32 %v361, %v585
        %v587 = vpop.f32.mrf.mxu0
        %v588 = vadd.f32 %v365, %v587
        %589 = vmatprep.mubr.bf16.mxu0 0
        %590 = vmatmul.mubr.bf16.gmra.mxu0 %v426
        %v591 = vpop.f32.mrf.mxu0
        %v592 = vadd.f32 %v361, %v591
        %v593 = vpop.f32.mrf.mxu0
        %v594 = vadd.f32 %v365, %v593
        %v595 = vpop.f32.mrf.mxu0
        %v596 = vadd.f32 %v361, %v595
        %v597 = vpop.f32.mrf.mxu0
        %v598 = vadd.f32 %v365, %v597
        %599 = vmatprep.mubr.bf16.mxu0 0
        %600 = vmatmul.mubr.bf16.gmra.mxu0 %v429
        %v601 = vpop.f32.mrf.mxu0
        %v602 = vadd.f32 %v361, %v601
        %v603 = vpop.f32.mrf.mxu0
        %v604 = vadd.f32 %v365, %v603
        %v605 = vpop.f32.mrf.mxu0
        %v606 = vadd.f32 %v361, %v605
        %v607 = vpop.f32.mrf.mxu0
        %v608 = vadd.f32 %v365, %v607
        %609 = vmatprep.mubr.bf16.mxu0 0
        %610 = vmatmul.mubr.bf16.gmra.mxu0 %v432
        %v611 = vpop.f32.mrf.mxu0
        %v612 = vadd.f32 %v361, %v611
        %v613 = vpop.f32.mrf.mxu0
        %v614 = vadd.f32 %v365, %v613
        %v615 = vpop.f32.mrf.mxu0
        %v616 = vadd.f32 %v361, %v615
        %v617 = vpop.f32.mrf.mxu0
        %v618 = vadd.f32 %v365, %v617
        %619 = vmatprep.mubr.bf16.mxu0 0
        %620 = vmatmul.mubr.bf16.gmra.mxu0 %v435
        %v621 = vpop.f32.mrf.mxu0
        %v622 = vadd.f32 %v361, %v621
        %v623 = vpop.f32.mrf.mxu0
        %v624 = vadd.f32 %v365, %v623
        %v625 = vpop.f32.mrf.mxu0
        %v626 = vadd.f32 %v361, %v625
        %v627 = vpop.f32.mrf.mxu0
        %v628 = vadd.f32 %v365, %v627
        %629 = vdwg.mxu0
        %v630 = vpack.c.bf16 %v476, %v472
        %v631 = vpack.c.bf16 %v478, %v474
        %v632 = vpack.c.bf16 %v486, %v482
        %v633 = vpack.c.bf16 %v488, %v484
        %v634 = vpack.c.bf16 %v496, %v492
        %v635 = vpack.c.bf16 %v498, %v494
        %v636 = vpack.c.bf16 %v506, %v502
        %v637 = vpack.c.bf16 %v508, %v504
        %v638 = vpack.c.bf16 %v516, %v512
        %v639 = vpack.c.bf16 %v518, %v514
        %v640 = vpack.c.bf16 %v526, %v522
        %v641 = vpack.c.bf16 %v528, %v524
        %v642 = vpack.c.bf16 %v536, %v532
        %v643 = vpack.c.bf16 %v538, %v534
        %v644 = vpack.c.bf16 %v546, %v542
        %v645 = vpack.c.bf16 %v548, %v544
        %v646 = vpack.c.bf16 %v556, %v552
        %v647 = vpack.c.bf16 %v558, %v554
        %v648 = vpack.c.bf16 %v566, %v562
        %v649 = vpack.c.bf16 %v568, %v564
        %v650 = vpack.c.bf16 %v576, %v572
        %v651 = vpack.c.bf16 %v578, %v574
        %v652 = vpack.c.bf16 %v586, %v582
        %v653 = vpack.c.bf16 %v588, %v584
        %v654 = vpack.c.bf16 %v596, %v592
        %v655 = vpack.c.bf16 %v598, %v594
        %v656 = vpack.c.bf16 %v606, %v602
        %v657 = vpack.c.bf16 %v608, %v604
        %v658 = vpack.c.bf16 %v616, %v612
        %v659 = vpack.c.bf16 %v618, %v614
        %v660 = vpack.c.bf16 %v626, %v622
        %v661 = vpack.c.bf16 %v628, %v624
        %vm662 = vcmp.gt.bf16.partialorder %v630, 0
        %vm663 = vcmp.gt.bf16.partialorder %v631, 0
        %vm664 = vcmp.gt.bf16.partialorder %v632, 0
        %vm665 = vcmp.gt.bf16.partialorder %v633, 0
        %vm666 = vcmp.gt.bf16.partialorder %v634, 0
        %vm667 = vcmp.gt.bf16.partialorder %v635, 0
        %vm668 = vcmp.gt.bf16.partialorder %v636, 0
        %vm669 = vcmp.gt.bf16.partialorder %v637, 0
        %vm670 = vcmp.gt.bf16.partialorder %v638, 0
        %vm671 = vcmp.gt.bf16.partialorder %v639, 0
        %vm672 = vcmp.gt.bf16.partialorder %v640, 0
        %vm673 = vcmp.gt.bf16.partialorder %v641, 0
        %vm674 = vcmp.gt.bf16.partialorder %v642, 0
        %vm675 = vcmp.gt.bf16.partialorder %v643, 0
        %vm676 = vcmp.gt.bf16.partialorder %v644, 0
        %vm677 = vcmp.gt.bf16.partialorder %v645, 0
        %vm678 = vcmp.gt.bf16.partialorder %v646, 0
        %vm679 = vcmp.gt.bf16.partialorder %v647, 0
        %vm680 = vcmp.gt.bf16.partialorder %v648, 0
        %vm681 = vcmp.gt.bf16.partialorder %v649, 0
        %vm682 = vcmp.gt.bf16.partialorder %v650, 0
        %vm683 = vcmp.gt.bf16.partialorder %v651, 0
        %vm684 = vcmp.gt.bf16.partialorder %v652, 0
        %vm685 = vcmp.gt.bf16.partialorder %v653, 0
        %vm686 = vcmp.gt.bf16.partialorder %v654, 0
        %vm687 = vcmp.gt.bf16.partialorder %v655, 0
        %vm688 = vcmp.gt.bf16.partialorder %v656, 0
        %vm689 = vcmp.gt.bf16.partialorder %v657, 0
        %vm690 = vcmp.gt.bf16.partialorder %v658, 0
        %vm691 = vcmp.gt.bf16.partialorder %v659, 0
        %vm692 = vcmp.gt.bf16.partialorder %v660, 0
        %vm693 = vcmp.gt.bf16.partialorder %v661, 0
        %v695 = vmul.bf16 %v630, 1069105081
        %v696 = vpow.bf16.pop %v695
        %v698 = vmul.bf16 %v631, 1069105081
        %v699 = vpow.bf16.pop %v698
        %v701 = vmul.bf16 %v632, 1069105081
        %v702 = vpow.bf16.pop %v701
        %v704 = vmul.bf16 %v633, 1069105081
        %v705 = vpow.bf16.pop %v704
        %v707 = vmul.bf16 %v634, 1069105081
        %v708 = vpow.bf16.pop %v707
        %v710 = vmul.bf16 %v635, 1069105081
        %v711 = vpow.bf16.pop %v710
        %v713 = vmul.bf16 %v636, 1069105081
        %v714 = vpow.bf16.pop %v713
        %v716 = vmul.bf16 %v637, 1069105081
        %v717 = vpow.bf16.pop %v716
        %v719 = vmul.bf16 %v638, 1069105081
        %v720 = vpow.bf16.pop %v719
        %v722 = vmul.bf16 %v639, 1069105081
        %v723 = vpow.bf16.pop %v722
        %v725 = vmul.bf16 %v640, 1069105081
        %v726 = vpow.bf16.pop %v725
        %v728 = vmul.bf16 %v641, 1069105081
        %v729 = vpow.bf16.pop %v728
        %v731 = vmul.bf16 %v642, 1069105081
        %v732 = vpow.bf16.pop %v731
        %v734 = vmul.bf16 %v643, 1069105081
        %v735 = vpow.bf16.pop %v734
        %v737 = vmul.bf16 %v644, 1069105081
        %v738 = vpow.bf16.pop %v737
        %v740 = vmul.bf16 %v645, 1069105081
        %v741 = vpow.bf16.pop %v740
        %v743 = vmul.bf16 %v646, 1069105081
        %v744 = vpow.bf16.pop %v743
        %v746 = vmul.bf16 %v647, 1069105081
        %v747 = vpow.bf16.pop %v746
        %v749 = vmul.bf16 %v648, 1069105081
        %v750 = vpow.bf16.pop %v749
        %v752 = vmul.bf16 %v649, 1069105081
        %v753 = vpow.bf16.pop %v752
        %v755 = vmul.bf16 %v650, 1069105081
        %v756 = vpow.bf16.pop %v755
        %v758 = vmul.bf16 %v651, 1069105081
        %v759 = vpow.bf16.pop %v758
        %v761 = vmul.bf16 %v652, 1069105081
        %v762 = vpow.bf16.pop %v761
        %v764 = vmul.bf16 %v653, 1069105081
        %v765 = vpow.bf16.pop %v764
        %v767 = vmul.bf16 %v654, 1069105081
        %v768 = vpow.bf16.pop %v767
        %v770 = vmul.bf16 %v655, 1069105081
        %v771 = vpow.bf16.pop %v770
        %v773 = vmul.bf16 %v656, 1069105081
        %v774 = vpow.bf16.pop %v773
        %v776 = vmul.bf16 %v657, 1069105081
        %v777 = vpow.bf16.pop %v776
        %v779 = vmul.bf16 %v658, 1069105081
        %v780 = vpow.bf16.pop %v779
        %v782 = vmul.bf16 %v659, 1069105081
        %v783 = vpow.bf16.pop %v782
        %v785 = vmul.bf16 %v660, 1069105081
        %v786 = vpow.bf16.pop %v785
        %v788 = vmul.bf16 %v661, 1069105081
        %v789 = vpow.bf16.pop %v788
        %v790 = vsub.bf16 %v696, 1065369472
        %v791 = vsub.bf16 %v699, 1065369472
        %v792 = vsub.bf16 %v702, 1065369472
        %v793 = vsub.bf16 %v705, 1065369472
        %v794 = vsub.bf16 %v708, 1065369472
        %v795 = vsub.bf16 %v711, 1065369472
        %v796 = vsub.bf16 %v714, 1065369472
        %v797 = vsub.bf16 %v717, 1065369472
        %v798 = vsub.bf16 %v720, 1065369472
        %v799 = vsub.bf16 %v723, 1065369472
        %v800 = vsub.bf16 %v726, 1065369472
        %v801 = vsub.bf16 %v729, 1065369472
        %v802 = vsub.bf16 %v732, 1065369472
        %v803 = vsub.bf16 %v735, 1065369472
        %v804 = vsub.bf16 %v738, 1065369472
        %v805 = vsub.bf16 %v741, 1065369472
        %v806 = vsub.bf16 %v744, 1065369472
        %v807 = vsub.bf16 %v747, 1065369472
        %v808 = vsub.bf16 %v750, 1065369472
        %v809 = vsub.bf16 %v753, 1065369472
        %v810 = vsub.bf16 %v756, 1065369472
        %v811 = vsub.bf16 %v759, 1065369472
        %v812 = vsub.bf16 %v762, 1065369472
        %v813 = vsub.bf16 %v765, 1065369472
        %v814 = vsub.bf16 %v768, 1065369472
        %v815 = vsub.bf16 %v771, 1065369472
        %v816 = vsub.bf16 %v774, 1065369472
        %v817 = vsub.bf16 %v777, 1065369472
        %v818 = vsub.bf16 %v780, 1065369472
        %v819 = vsub.bf16 %v783, 1065369472
        %v820 = vsub.bf16 %v786, 1065369472
        %v821 = vsub.bf16 %v789, 1065369472
        %v822 = vsel %vm662, %v630, %v790
        %v823 = vsel %vm663, %v631, %v791
        %v824 = vsel %vm664, %v632, %v792
        %v825 = vsel %vm665, %v633, %v793
        %v826 = vsel %vm666, %v634, %v794
        %v827 = vsel %vm667, %v635, %v795
        %v828 = vsel %vm668, %v636, %v796
        %v829 = vsel %vm669, %v637, %v797
        %v830 = vsel %vm670, %v638, %v798
        %v831 = vsel %vm671, %v639, %v799
        %v832 = vsel %vm672, %v640, %v800
        %v833 = vsel %vm673, %v641, %v801
        %v834 = vsel %vm674, %v642, %v802
        %v835 = vsel %vm675, %v643, %v803
        %v836 = vsel %vm676, %v644, %v804
        %v837 = vsel %vm677, %v645, %v805
        %v838 = vsel %vm678, %v646, %v806
        %v839 = vsel %vm679, %v647, %v807
        %v840 = vsel %vm680, %v648, %v808
        %v841 = vsel %vm681, %v649, %v809
        %v842 = vsel %vm682, %v650, %v810
        %v843 = vsel %vm683, %v651, %v811
        %v844 = vsel %vm684, %v652, %v812
        %v845 = vsel %vm685, %v653, %v813
        %v846 = vsel %vm686, %v654, %v814
        %v847 = vsel %vm687, %v655, %v815
        %v848 = vsel %vm688, %v656, %v816
        %v849 = vsel %vm689, %v657, %v817
        %v850 = vsel %vm690, %v658, %v818
        %v851 = vsel %vm691, %v659, %v819
        %v852 = vsel %vm692, %v660, %v820
        %v853 = vsel %vm693, %v661, %v821
        %v854 = vld [vmem:[%s3] sm:$0xff]
        %v855 = vld [vmem:[%s3 + $0x8] sm:$0xff]
        %v856 = vld [vmem:[%s3 + $0x10] sm:$0xff]
        %v857 = vld [vmem:[%s3 + $0x18] sm:$0xff]
        %v858 = vld [vmem:[%s3 + $0x20] sm:$0xff]
        %v859 = vld [vmem:[%s3 + $0x28] sm:$0xff]
        %v860 = vld [vmem:[%s3 + $0x30] sm:$0xff]
        %v861 = vld [vmem:[%s3 + $0x38] sm:$0xff]
        %v862 = vld [vmem:[%s3 + $0x40] sm:$0xff]
        %v863 = vld [vmem:[%s3 + $0x48] sm:$0xff]
        %v864 = vld [vmem:[%s3 + $0x50] sm:$0xff]
        %v865 = vld [vmem:[%s3 + $0x58] sm:$0xff]
        %v866 = vld [vmem:[%s3 + $0x60] sm:$0xff]
        %v867 = vld [vmem:[%s3 + $0x68] sm:$0xff]
        %v868 = vld [vmem:[%s3 + $0x70] sm:$0xff]
        %v869 = vld [vmem:[%s3 + $0x78] sm:$0xff]
        %v870 = vld [vmem:[%s3 + $0x80] sm:$0xff]
        %v871 = vld [vmem:[%s3 + $0x88] sm:$0xff]
        %v872 = vld [vmem:[%s3 + $0x90] sm:$0xff]
        %v873 = vld [vmem:[%s3 + $0x98] sm:$0xff]
        %v874 = vld [vmem:[%s3 + $0xa0] sm:$0xff]
        %v875 = vld [vmem:[%s3 + $0xa8] sm:$0xff]
        %v876 = vld [vmem:[%s3 + $0xb0] sm:$0xff]
        %v877 = vld [vmem:[%s3 + $0xb8] sm:$0xff]
        %v878 = vld [vmem:[%s3 + $0xc0] sm:$0xff]
        %v879 = vld [vmem:[%s3 + $0xc8] sm:$0xff]
        %v880 = vld [vmem:[%s3 + $0xd0] sm:$0xff]
        %v881 = vld [vmem:[%s3 + $0xd8] sm:$0xff]
        %v882 = vld [vmem:[%s3 + $0xe0] sm:$0xff]
        %v883 = vld [vmem:[%s3 + $0xe8] sm:$0xff]
        %v884 = vld [vmem:[%s3 + $0xf0] sm:$0xff]
        %v885 = vld [vmem:[%s3 + $0xf8] sm:$0xff]
        %v886 = vld [vmem:[%s4] sm:$0x3]
        %v888 = vlaneseq
        %v889 = vshrl.u32 %v888, 7
        %v890 = vsub.s32 0, %v889
        %v891 = vrot.slane %v886, %v890
        %v892 = vlaneseq
        %v893 = vshrl.u32 %v892, 7
        %v894 = vsub.s32 1, %v893
        %v895 = vrot.slane %v886, %v894
        %v930 = vunpack.c.l.b16 %v854
        %v931 = vunpack.c.h.b16 %v854
        %v932 = vunpack.c.l.b16 %v855
        %v933 = vunpack.c.h.b16 %v855
        %v934 = vunpack.c.l.b16 %v856
        %v935 = vunpack.c.h.b16 %v856
        %v936 = vunpack.c.l.b16 %v857
        %v937 = vunpack.c.h.b16 %v857
        %v938 = vunpack.c.l.b16 %v858
        %v939 = vunpack.c.h.b16 %v858
        %v940 = vunpack.c.l.b16 %v859
        %v941 = vunpack.c.h.b16 %v859
        %v942 = vunpack.c.l.b16 %v860
        %v943 = vunpack.c.h.b16 %v860
        %v944 = vunpack.c.l.b16 %v861
        %v945 = vunpack.c.h.b16 %v861
        %v946 = vunpack.c.l.b16 %v862
        %v947 = vunpack.c.h.b16 %v862
        %v948 = vunpack.c.l.b16 %v863
        %v949 = vunpack.c.h.b16 %v863
        %v950 = vunpack.c.l.b16 %v864
        %v951 = vunpack.c.h.b16 %v864
        %v952 = vunpack.c.l.b16 %v865
        %v953 = vunpack.c.h.b16 %v865
        %v954 = vunpack.c.l.b16 %v866
        %v955 = vunpack.c.h.b16 %v866
        %v956 = vunpack.c.l.b16 %v867
        %v957 = vunpack.c.h.b16 %v867
        %v958 = vunpack.c.l.b16 %v868
        %v959 = vunpack.c.h.b16 %v868
        %v960 = vunpack.c.l.b16 %v869
        %v961 = vunpack.c.h.b16 %v869
        %v962 = vunpack.c.l.b16 %v870
        %v963 = vunpack.c.h.b16 %v870
        %v964 = vunpack.c.l.b16 %v871
        %v965 = vunpack.c.h.b16 %v871
        %v966 = vunpack.c.l.b16 %v872
        %v967 = vunpack.c.h.b16 %v872
        %v968 = vunpack.c.l.b16 %v873
        %v969 = vunpack.c.h.b16 %v873
        %v970 = vunpack.c.l.b16 %v874
        %v971 = vunpack.c.h.b16 %v874
        %v972 = vunpack.c.l.b16 %v875
        %v973 = vunpack.c.h.b16 %v875
        %v974 = vunpack.c.l.b16 %v876
        %v975 = vunpack.c.h.b16 %v876
        %v976 = vunpack.c.l.b16 %v877
        %v977 = vunpack.c.h.b16 %v877
        %v978 = vunpack.c.l.b16 %v878
        %v979 = vunpack.c.h.b16 %v878
        %v980 = vunpack.c.l.b16 %v879
        %v981 = vunpack.c.h.b16 %v879
        %v982 = vunpack.c.l.b16 %v880
        %v983 = vunpack.c.h.b16 %v880
        %v984 = vunpack.c.l.b16 %v881
        %v985 = vunpack.c.h.b16 %v881
        %v986 = vunpack.c.l.b16 %v882
        %v987 = vunpack.c.h.b16 %v882
        %v988 = vunpack.c.l.b16 %v883
        %v989 = vunpack.c.h.b16 %v883
        %v990 = vunpack.c.l.b16 %v884
        %v991 = vunpack.c.h.b16 %v884
        %v992 = vunpack.c.l.b16 %v885
        %v993 = vunpack.c.h.b16 %v885
        %v994 = vpack.c.b16 %v932, %v930
        %v995 = vpack.c.b16 %v933, %v931
        %v996 = vpack.c.b16 %v936, %v934
        %v997 = vpack.c.b16 %v937, %v935
        %v998 = vpack.c.b16 %v940, %v938
        %v999 = vpack.c.b16 %v941, %v939
        %v1000 = vpack.c.b16 %v944, %v942
        %v1001 = vpack.c.b16 %v945, %v943
        %v1002 = vpack.c.b16 %v948, %v946
        %v1003 = vpack.c.b16 %v949, %v947
        %v1004 = vpack.c.b16 %v952, %v950
        %v1005 = vpack.c.b16 %v953, %v951
        %v1006 = vpack.c.b16 %v956, %v954
        %v1007 = vpack.c.b16 %v957, %v955
        %v1008 = vpack.c.b16 %v960, %v958
        %v1009 = vpack.c.b16 %v961, %v959
        %v1010 = vpack.c.b16 %v964, %v962
        %v1011 = vpack.c.b16 %v965, %v963
        %v1012 = vpack.c.b16 %v968, %v966
        %v1013 = vpack.c.b16 %v969, %v967
        %v1014 = vpack.c.b16 %v972, %v970
        %v1015 = vpack.c.b16 %v973, %v971
        %v1016 = vpack.c.b16 %v976, %v974
        %v1017 = vpack.c.b16 %v977, %v975
        %v1018 = vpack.c.b16 %v980, %v978
        %v1019 = vpack.c.b16 %v981, %v979
        %v1020 = vpack.c.b16 %v984, %v982
        %v1021 = vpack.c.b16 %v985, %v983
        %v1022 = vpack.c.b16 %v988, %v986
        %v1023 = vpack.c.b16 %v989, %v987
        %v1024 = vpack.c.b16 %v992, %v990
        %v1025 = vpack.c.b16 %v993, %v991
        %1058 = vmatprep.subr.bf16.mxu0 %v1009
        %1059 = vmatpush1.bf16.msra.mxu0 %v1008
        %1060 = vmatprep.subr.bf16.mxu0 %v1007
        %1061 = vmatpush1.bf16.msra.mxu0 %v1006
        %1062 = vmatprep.subr.bf16.mxu0 %v1005
        %1063 = vmatpush1.bf16.msra.mxu0 %v1004
        %1064 = vmatprep.subr.bf16.mxu0 %v1003
        %1065 = vmatpush1.bf16.msra.mxu0 %v1002
        %1066 = vmatprep.subr.bf16.mxu0 %v1001
        %1067 = vmatpush1.bf16.msra.mxu0 %v1000
        %1068 = vmatprep.subr.bf16.mxu0 %v999
        %1069 = vmatpush1.bf16.msra.mxu0 %v998
        %1070 = vmatprep.subr.bf16.mxu0 %v997
        %1071 = vmatpush1.bf16.msra.mxu0 %v996
        %1072 = vmatprep.subr.bf16.mxu0 %v995
        %1073 = vmatpush1.bf16.msra.mxu0 %v994
        %1074 = vmatprep.subr.bf16.mxu0 %v1025
        %1075 = vmatpush2.bf16.msra.mxu0 %v1024
        %1076 = vmatprep.subr.bf16.mxu0 %v1023
        %1077 = vmatpush2.bf16.msra.mxu0 %v1022
        %1078 = vmatprep.subr.bf16.mxu0 %v1021
        %1079 = vmatpush2.bf16.msra.mxu0 %v1020
        %1080 = vmatprep.subr.bf16.mxu0 %v1019
        %1081 = vmatpush2.bf16.msra.mxu0 %v1018
        %1082 = vmatprep.subr.bf16.mxu0 %v1017
        %1083 = vmatpush2.bf16.msra.mxu0 %v1016
        %1084 = vmatprep.subr.bf16.mxu0 %v1015
        %1085 = vmatpush2.bf16.msra.mxu0 %v1014
        %1086 = vmatprep.subr.bf16.mxu0 %v1013
        %1087 = vmatpush2.bf16.msra.mxu0 %v1012
        %1088 = vmatprep.subr.bf16.mxu0 %v1011
        %1089 = vmatpush2.bf16.msra.mxu0 %v1010
        %1090 = vmatprep.mubr.bf16.mxu0 %v823
        %1091 = vmatmul.mubr.bf16.gmra.mxu0 %v822
        %v1092 = vpop.f32.mrf.mxu0
        %v1093 = vadd.f32 %v891, %v1092
        %v1094 = vpop.f32.mrf.mxu0
        %v1095 = vadd.f32 %v895, %v1094
        %v1096 = vpop.f32.mrf.mxu0
        %v1097 = vadd.f32 %v891, %v1096
        %v1098 = vpop.f32.mrf.mxu0
        %v1099 = vadd.f32 %v895, %v1098
        %1100 = vmatprep.mubr.bf16.mxu0 %v825
        %1101 = vmatmul.mubr.bf16.gmra.mxu0 %v824
        %v1102 = vpop.f32.mrf.mxu0
        %v1103 = vadd.f32 %v891, %v1102
        %v1104 = vpop.f32.mrf.mxu0
        %v1105 = vadd.f32 %v895, %v1104
        %v1106 = vpop.f32.mrf.mxu0
        %v1107 = vadd.f32 %v891, %v1106
        %v1108 = vpop.f32.mrf.mxu0
        %v1109 = vadd.f32 %v895, %v1108
        %1110 = vmatprep.mubr.bf16.mxu0 %v827
        %1111 = vmatmul.mubr.bf16.gmra.mxu0 %v826
        %v1112 = vpop.f32.mrf.mxu0
        %v1113 = vadd.f32 %v891, %v1112
        %v1114 = vpop.f32.mrf.mxu0
        %v1115 = vadd.f32 %v895, %v1114
        %v1116 = vpop.f32.mrf.mxu0
        %v1117 = vadd.f32 %v891, %v1116
        %v1118 = vpop.f32.mrf.mxu0
        %v1119 = vadd.f32 %v895, %v1118
        %1120 = vmatprep.mubr.bf16.mxu0 %v829
        %1121 = vmatmul.mubr.bf16.gmra.mxu0 %v828
        %v1122 = vpop.f32.mrf.mxu0
        %v1123 = vadd.f32 %v891, %v1122
        %v1124 = vpop.f32.mrf.mxu0
        %v1125 = vadd.f32 %v895, %v1124
        %v1126 = vpop.f32.mrf.mxu0
        %v1127 = vadd.f32 %v891, %v1126
        %v1128 = vpop.f32.mrf.mxu0
        %v1129 = vadd.f32 %v895, %v1128
        %1130 = vmatprep.mubr.bf16.mxu0 %v831
        %1131 = vmatmul.mubr.bf16.gmra.mxu0 %v830
        %v1132 = vpop.f32.mrf.mxu0
        %v1133 = vadd.f32 %v891, %v1132
        %v1134 = vpop.f32.mrf.mxu0
        %v1135 = vadd.f32 %v895, %v1134
        %v1136 = vpop.f32.mrf.mxu0
        %v1137 = vadd.f32 %v891, %v1136
        %v1138 = vpop.f32.mrf.mxu0
        %v1139 = vadd.f32 %v895, %v1138
        %1140 = vmatprep.mubr.bf16.mxu0 %v833
        %1141 = vmatmul.mubr.bf16.gmra.mxu0 %v832
        %v1142 = vpop.f32.mrf.mxu0
        %v1143 = vadd.f32 %v891, %v1142
        %v1144 = vpop.f32.mrf.mxu0
        %v1145 = vadd.f32 %v895, %v1144
        %v1146 = vpop.f32.mrf.mxu0
        %v1147 = vadd.f32 %v891, %v1146
        %v1148 = vpop.f32.mrf.mxu0
        %v1149 = vadd.f32 %v895, %v1148
        %1150 = vmatprep.mubr.bf16.mxu0 %v835
        %1151 = vmatmul.mubr.bf16.gmra.mxu0 %v834
        %v1152 = vpop.f32.mrf.mxu0
        %v1153 = vadd.f32 %v891, %v1152
        %v1154 = vpop.f32.mrf.mxu0
        %v1155 = vadd.f32 %v895, %v1154
        %v1156 = vpop.f32.mrf.mxu0
        %v1157 = vadd.f32 %v891, %v1156
        %v1158 = vpop.f32.mrf.mxu0
        %v1159 = vadd.f32 %v895, %v1158
        %1160 = vmatprep.mubr.bf16.mxu0 %v837
        %1161 = vmatmul.mubr.bf16.gmra.mxu0 %v836
        %v1162 = vpop.f32.mrf.mxu0
        %v1163 = vadd.f32 %v891, %v1162
        %v1164 = vpop.f32.mrf.mxu0
        %v1165 = vadd.f32 %v895, %v1164
        %v1166 = vpop.f32.mrf.mxu0
        %v1167 = vadd.f32 %v891, %v1166
        %v1168 = vpop.f32.mrf.mxu0
        %v1169 = vadd.f32 %v895, %v1168
        %1170 = vmatprep.mubr.bf16.mxu0 %v839
        %1171 = vmatmul.mubr.bf16.gmra.mxu0 %v838
        %v1172 = vpop.f32.mrf.mxu0
        %v1173 = vadd.f32 %v891, %v1172
        %v1174 = vpop.f32.mrf.mxu0
        %v1175 = vadd.f32 %v895, %v1174
        %v1176 = vpop.f32.mrf.mxu0
        %v1177 = vadd.f32 %v891, %v1176
        %v1178 = vpop.f32.mrf.mxu0
        %v1179 = vadd.f32 %v895, %v1178
        %1180 = vmatprep.mubr.bf16.mxu0 %v841
        %1181 = vmatmul.mubr.bf16.gmra.mxu0 %v840
        %v1182 = vpop.f32.mrf.mxu0
        %v1183 = vadd.f32 %v891, %v1182
        %v1184 = vpop.f32.mrf.mxu0
        %v1185 = vadd.f32 %v895, %v1184
        %v1186 = vpop.f32.mrf.mxu0
        %v1187 = vadd.f32 %v891, %v1186
        %v1188 = vpop.f32.mrf.mxu0
        %v1189 = vadd.f32 %v895, %v1188
        %1190 = vmatprep.mubr.bf16.mxu0 %v843
        %1191 = vmatmul.mubr.bf16.gmra.mxu0 %v842
        %v1192 = vpop.f32.mrf.mxu0
        %v1193 = vadd.f32 %v891, %v1192
        %v1194 = vpop.f32.mrf.mxu0
        %v1195 = vadd.f32 %v895, %v1194
        %v1196 = vpop.f32.mrf.mxu0
        %v1197 = vadd.f32 %v891, %v1196
        %v1198 = vpop.f32.mrf.mxu0
        %v1199 = vadd.f32 %v895, %v1198
        %1200 = vmatprep.mubr.bf16.mxu0 %v845
        %1201 = vmatmul.mubr.bf16.gmra.mxu0 %v844
        %v1202 = vpop.f32.mrf.mxu0
        %v1203 = vadd.f32 %v891, %v1202
        %v1204 = vpop.f32.mrf.mxu0
        %v1205 = vadd.f32 %v895, %v1204
        %v1206 = vpop.f32.mrf.mxu0
        %v1207 = vadd.f32 %v891, %v1206
        %v1208 = vpop.f32.mrf.mxu0
        %v1209 = vadd.f32 %v895, %v1208
        %1210 = vmatprep.mubr.bf16.mxu0 %v847
        %1211 = vmatmul.mubr.bf16.gmra.mxu0 %v846
        %v1212 = vpop.f32.mrf.mxu0
        %v1213 = vadd.f32 %v891, %v1212
        %v1214 = vpop.f32.mrf.mxu0
        %v1215 = vadd.f32 %v895, %v1214
        %v1216 = vpop.f32.mrf.mxu0
        %v1217 = vadd.f32 %v891, %v1216
        %v1218 = vpop.f32.mrf.mxu0
        %v1219 = vadd.f32 %v895, %v1218
        %1220 = vmatprep.mubr.bf16.mxu0 %v849
        %1221 = vmatmul.mubr.bf16.gmra.mxu0 %v848
        %v1222 = vpop.f32.mrf.mxu0
        %v1223 = vadd.f32 %v891, %v1222
        %v1224 = vpop.f32.mrf.mxu0
        %v1225 = vadd.f32 %v895, %v1224
        %v1226 = vpop.f32.mrf.mxu0
        %v1227 = vadd.f32 %v891, %v1226
        %v1228 = vpop.f32.mrf.mxu0
        %v1229 = vadd.f32 %v895, %v1228
        %1230 = vmatprep.mubr.bf16.mxu0 %v851
        %1231 = vmatmul.mubr.bf16.gmra.mxu0 %v850
        %v1232 = vpop.f32.mrf.mxu0
        %v1233 = vadd.f32 %v891, %v1232
        %v1234 = vpop.f32.mrf.mxu0
        %v1235 = vadd.f32 %v895, %v1234
        %v1236 = vpop.f32.mrf.mxu0
        %v1237 = vadd.f32 %v891, %v1236
        %v1238 = vpop.f32.mrf.mxu0
        %v1239 = vadd.f32 %v895, %v1238
        %1240 = vmatprep.mubr.bf16.mxu0 %v853
        %1241 = vmatmul.mubr.bf16.gmra.mxu0 %v852
        %v1242 = vpop.f32.mrf.mxu0
        %v1243 = vadd.f32 %v891, %v1242
        %v1244 = vpop.f32.mrf.mxu0
        %v1245 = vadd.f32 %v895, %v1244
        %v1246 = vpop.f32.mrf.mxu0
        %v1247 = vadd.f32 %v891, %v1246
        %v1248 = vpop.f32.mrf.mxu0
        %v1249 = vadd.f32 %v895, %v1248
        %1250 = vdwg.mxu0
        %v1251 = vpack.c.bf16 %v1097, %v1093
        %v1252 = vpack.c.bf16 %v1099, %v1095
        %v1253 = vpack.c.bf16 %v1107, %v1103
        %v1254 = vpack.c.bf16 %v1109, %v1105
        %v1255 = vpack.c.bf16 %v1117, %v1113
        %v1256 = vpack.c.bf16 %v1119, %v1115
        %v1257 = vpack.c.bf16 %v1127, %v1123
        %v1258 = vpack.c.bf16 %v1129, %v1125
        %v1259 = vpack.c.bf16 %v1137, %v1133
        %v1260 = vpack.c.bf16 %v1139, %v1135
        %v1261 = vpack.c.bf16 %v1147, %v1143
        %v1262 = vpack.c.bf16 %v1149, %v1145
        %v1263 = vpack.c.bf16 %v1157, %v1153
        %v1264 = vpack.c.bf16 %v1159, %v1155
        %v1265 = vpack.c.bf16 %v1167, %v1163
        %v1266 = vpack.c.bf16 %v1169, %v1165
        %v1267 = vpack.c.bf16 %v1177, %v1173
        %v1268 = vpack.c.bf16 %v1179, %v1175
        %v1269 = vpack.c.bf16 %v1187, %v1183
        %v1270 = vpack.c.bf16 %v1189, %v1185
        %v1271 = vpack.c.bf16 %v1197, %v1193
        %v1272 = vpack.c.bf16 %v1199, %v1195
        %v1273 = vpack.c.bf16 %v1207, %v1203
        %v1274 = vpack.c.bf16 %v1209, %v1205
        %v1275 = vpack.c.bf16 %v1217, %v1213
        %v1276 = vpack.c.bf16 %v1219, %v1215
        %v1277 = vpack.c.bf16 %v1227, %v1223
        %v1278 = vpack.c.bf16 %v1229, %v1225
        %v1279 = vpack.c.bf16 %v1237, %v1233
        %v1280 = vpack.c.bf16 %v1239, %v1235
        %v1281 = vpack.c.bf16 %v1247, %v1243
        %v1282 = vpack.c.bf16 %v1249, %v1245
        %vm1283 = vcmp.gt.bf16.partialorder %v1251, 0
        %vm1284 = vcmp.gt.bf16.partialorder %v1252, 0
        %vm1285 = vcmp.gt.bf16.partialorder %v1253, 0
        %vm1286 = vcmp.gt.bf16.partialorder %v1254, 0
        %vm1287 = vcmp.gt.bf16.partialorder %v1255, 0
        %vm1288 = vcmp.gt.bf16.partialorder %v1256, 0
        %vm1289 = vcmp.gt.bf16.partialorder %v1257, 0
        %vm1290 = vcmp.gt.bf16.partialorder %v1258, 0
        %vm1291 = vcmp.gt.bf16.partialorder %v1259, 0
        %vm1292 = vcmp.gt.bf16.partialorder %v1260, 0
        %vm1293 = vcmp.gt.bf16.partialorder %v1261, 0
        %vm1294 = vcmp.gt.bf16.partialorder %v1262, 0
        %vm1295 = vcmp.gt.bf16.partialorder %v1263, 0
        %vm1296 = vcmp.gt.bf16.partialorder %v1264, 0
        %vm1297 = vcmp.gt.bf16.partialorder %v1265, 0
        %vm1298 = vcmp.gt.bf16.partialorder %v1266, 0
        %vm1299 = vcmp.gt.bf16.partialorder %v1267, 0
        %vm1300 = vcmp.gt.bf16.partialorder %v1268, 0
        %vm1301 = vcmp.gt.bf16.partialorder %v1269, 0
        %vm1302 = vcmp.gt.bf16.partialorder %v1270, 0
        %vm1303 = vcmp.gt.bf16.partialorder %v1271, 0
        %vm1304 = vcmp.gt.bf16.partialorder %v1272, 0
        %vm1305 = vcmp.gt.bf16.partialorder %v1273, 0
        %vm1306 = vcmp.gt.bf16.partialorder %v1274, 0
        %vm1307 = vcmp.gt.bf16.partialorder %v1275, 0
        %vm1308 = vcmp.gt.bf16.partialorder %v1276, 0
        %vm1309 = vcmp.gt.bf16.partialorder %v1277, 0
        %vm1310 = vcmp.gt.bf16.partialorder %v1278, 0
        %vm1311 = vcmp.gt.bf16.partialorder %v1279, 0
        %vm1312 = vcmp.gt.bf16.partialorder %v1280, 0
        %vm1313 = vcmp.gt.bf16.partialorder %v1281, 0
        %vm1314 = vcmp.gt.bf16.partialorder %v1282, 0
        %v1316 = vmul.bf16 %v1251, 1069105081
        %v1317 = vpow.bf16.pop %v1316
        %v1319 = vmul.bf16 %v1252, 1069105081
        %v1320 = vpow.bf16.pop %v1319
        %v1322 = vmul.bf16 %v1253, 1069105081
        %v1323 = vpow.bf16.pop %v1322
        %v1325 = vmul.bf16 %v1254, 1069105081
        %v1326 = vpow.bf16.pop %v1325
        %v1328 = vmul.bf16 %v1255, 1069105081
        %v1329 = vpow.bf16.pop %v1328
        %v1331 = vmul.bf16 %v1256, 1069105081
        %v1332 = vpow.bf16.pop %v1331
        %v1334 = vmul.bf16 %v1257, 1069105081
        %v1335 = vpow.bf16.pop %v1334
        %v1337 = vmul.bf16 %v1258, 1069105081
        %v1338 = vpow.bf16.pop %v1337
        %v1340 = vmul.bf16 %v1259, 1069105081
        %v1341 = vpow.bf16.pop %v1340
        %v1343 = vmul.bf16 %v1260, 1069105081
        %v1344 = vpow.bf16.pop %v1343
        %v1346 = vmul.bf16 %v1261, 1069105081
        %v1347 = vpow.bf16.pop %v1346
        %v1349 = vmul.bf16 %v1262, 1069105081
        %v1350 = vpow.bf16.pop %v1349
        %v1352 = vmul.bf16 %v1263, 1069105081
        %v1353 = vpow.bf16.pop %v1352
        %v1355 = vmul.bf16 %v1264, 1069105081
        %v1356 = vpow.bf16.pop %v1355
        %v1358 = vmul.bf16 %v1265, 1069105081
        %v1359 = vpow.bf16.pop %v1358
        %v1361 = vmul.bf16 %v1266, 1069105081
        %v1362 = vpow.bf16.pop %v1361
        %v1364 = vmul.bf16 %v1267, 1069105081
        %v1365 = vpow.bf16.pop %v1364
        %v1367 = vmul.bf16 %v1268, 1069105081
        %v1368 = vpow.bf16.pop %v1367
        %v1370 = vmul.bf16 %v1269, 1069105081
        %v1371 = vpow.bf16.pop %v1370
        %v1373 = vmul.bf16 %v1270, 1069105081
        %v1374 = vpow.bf16.pop %v1373
        %v1376 = vmul.bf16 %v1271, 1069105081
        %v1377 = vpow.bf16.pop %v1376
        %v1379 = vmul.bf16 %v1272, 1069105081
        %v1380 = vpow.bf16.pop %v1379
        %v1382 = vmul.bf16 %v1273, 1069105081
        %v1383 = vpow.bf16.pop %v1382
        %v1385 = vmul.bf16 %v1274, 1069105081
        %v1386 = vpow.bf16.pop %v1385
        %v1388 = vmul.bf16 %v1275, 1069105081
        %v1389 = vpow.bf16.pop %v1388
        %v1391 = vmul.bf16 %v1276, 1069105081
        %v1392 = vpow.bf16.pop %v1391
        %v1394 = vmul.bf16 %v1277, 1069105081
        %v1395 = vpow.bf16.pop %v1394
        %v1397 = vmul.bf16 %v1278, 1069105081
        %v1398 = vpow.bf16.pop %v1397
        %v1400 = vmul.bf16 %v1279, 1069105081
        %v1401 = vpow.bf16.pop %v1400
        %v1403 = vmul.bf16 %v1280, 1069105081
        %v1404 = vpow.bf16.pop %v1403
        %v1406 = vmul.bf16 %v1281, 1069105081
        %v1407 = vpow.bf16.pop %v1406
        %v1409 = vmul.bf16 %v1282, 1069105081
        %v1410 = vpow.bf16.pop %v1409
        %v1411 = vsub.bf16 %v1317, 1065369472
        %v1412 = vsub.bf16 %v1320, 1065369472
        %v1413 = vsub.bf16 %v1323, 1065369472
        %v1414 = vsub.bf16 %v1326, 1065369472
        %v1415 = vsub.bf16 %v1329, 1065369472
        %v1416 = vsub.bf16 %v1332, 1065369472
        %v1417 = vsub.bf16 %v1335, 1065369472
        %v1418 = vsub.bf16 %v1338, 1065369472
        %v1419 = vsub.bf16 %v1341, 1065369472
        %v1420 = vsub.bf16 %v1344, 1065369472
        %v1421 = vsub.bf16 %v1347, 1065369472
        %v1422 = vsub.bf16 %v1350, 1065369472
        %v1423 = vsub.bf16 %v1353, 1065369472
        %v1424 = vsub.bf16 %v1356, 1065369472
        %v1425 = vsub.bf16 %v1359, 1065369472
        %v1426 = vsub.bf16 %v1362, 1065369472
        %v1427 = vsub.bf16 %v1365, 1065369472
        %v1428 = vsub.bf16 %v1368, 1065369472
        %v1429 = vsub.bf16 %v1371, 1065369472
        %v1430 = vsub.bf16 %v1374, 1065369472
        %v1431 = vsub.bf16 %v1377, 1065369472
        %v1432 = vsub.bf16 %v1380, 1065369472
        %v1433 = vsub.bf16 %v1383, 1065369472
        %v1434 = vsub.bf16 %v1386, 1065369472
        %v1435 = vsub.bf16 %v1389, 1065369472
        %v1436 = vsub.bf16 %v1392, 1065369472
        %v1437 = vsub.bf16 %v1395, 1065369472
        %v1438 = vsub.bf16 %v1398, 1065369472
        %v1439 = vsub.bf16 %v1401, 1065369472
        %v1440 = vsub.bf16 %v1404, 1065369472
        %v1441 = vsub.bf16 %v1407, 1065369472
        %v1442 = vsub.bf16 %v1410, 1065369472
        %v1443 = vsel %vm1283, %v1251, %v1411
        %v1444 = vsel %vm1284, %v1252, %v1412
        %v1445 = vsel %vm1285, %v1253, %v1413
        %v1446 = vsel %vm1286, %v1254, %v1414
        %v1447 = vsel %vm1287, %v1255, %v1415
        %v1448 = vsel %vm1288, %v1256, %v1416
        %v1449 = vsel %vm1289, %v1257, %v1417
        %v1450 = vsel %vm1290, %v1258, %v1418
        %v1451 = vsel %vm1291, %v1259, %v1419
        %v1452 = vsel %vm1292, %v1260, %v1420
        %v1453 = vsel %vm1293, %v1261, %v1421
        %v1454 = vsel %vm1294, %v1262, %v1422
        %v1455 = vsel %vm1295, %v1263, %v1423
        %v1456 = vsel %vm1296, %v1264, %v1424
        %v1457 = vsel %vm1297, %v1265, %v1425
        %v1458 = vsel %vm1298, %v1266, %v1426
        %v1459 = vsel %vm1299, %v1267, %v1427
        %v1460 = vsel %vm1300, %v1268, %v1428
        %v1461 = vsel %vm1301, %v1269, %v1429
        %v1462 = vsel %vm1302, %v1270, %v1430
        %v1463 = vsel %vm1303, %v1271, %v1431
        %v1464 = vsel %vm1304, %v1272, %v1432
        %v1465 = vsel %vm1305, %v1273, %v1433
        %v1466 = vsel %vm1306, %v1274, %v1434
        %v1467 = vsel %vm1307, %v1275, %v1435
        %v1468 = vsel %vm1308, %v1276, %v1436
        %v1469 = vsel %vm1309, %v1277, %v1437
        %v1470 = vsel %vm1310, %v1278, %v1438
        %v1471 = vsel %vm1311, %v1279, %v1439
        %v1472 = vsel %vm1312, %v1280, %v1440
        %v1473 = vsel %vm1313, %v1281, %v1441
        %v1474 = vsel %vm1314, %v1282, %v1442
        %v1475 = vunpack.c.l.bf16 %v1443
        %v1476 = vunpack.c.l.bf16 %v1444
        %v1477 = vunpack.c.h.bf16 %v1443
        %v1478 = vunpack.c.h.bf16 %v1444
        %v1479 = vunpack.c.l.bf16 %v1445
        %v1480 = vunpack.c.l.bf16 %v1446
        %v1481 = vunpack.c.h.bf16 %v1445
        %v1482 = vunpack.c.h.bf16 %v1446
        %v1483 = vunpack.c.l.bf16 %v1447
        %v1484 = vunpack.c.l.bf16 %v1448
        %v1485 = vunpack.c.h.bf16 %v1447
        %v1486 = vunpack.c.h.bf16 %v1448
        %v1487 = vunpack.c.l.bf16 %v1449
        %v1488 = vunpack.c.l.bf16 %v1450
        %v1489 = vunpack.c.h.bf16 %v1449
        %v1490 = vunpack.c.h.bf16 %v1450
        %v1491 = vunpack.c.l.bf16 %v1451
        %v1492 = vunpack.c.l.bf16 %v1452
        %v1493 = vunpack.c.h.bf16 %v1451
        %v1494 = vunpack.c.h.bf16 %v1452
        %v1495 = vunpack.c.l.bf16 %v1453
        %v1496 = vunpack.c.l.bf16 %v1454
        %v1497 = vunpack.c.h.bf16 %v1453
        %v1498 = vunpack.c.h.bf16 %v1454
        %v1499 = vunpack.c.l.bf16 %v1455
        %v1500 = vunpack.c.l.bf16 %v1456
        %v1501 = vunpack.c.h.bf16 %v1455
        %v1502 = vunpack.c.h.bf16 %v1456
        %v1503 = vunpack.c.l.bf16 %v1457
        %v1504 = vunpack.c.l.bf16 %v1458
        %v1505 = vunpack.c.h.bf16 %v1457
        %v1506 = vunpack.c.h.bf16 %v1458
        %v1507 = vunpack.c.l.bf16 %v1459
        %v1508 = vunpack.c.l.bf16 %v1460
        %v1509 = vunpack.c.h.bf16 %v1459
        %v1510 = vunpack.c.h.bf16 %v1460
        %v1511 = vunpack.c.l.bf16 %v1461
        %v1512 = vunpack.c.l.bf16 %v1462
        %v1513 = vunpack.c.h.bf16 %v1461
        %v1514 = vunpack.c.h.bf16 %v1462
        %v1515 = vunpack.c.l.bf16 %v1463
        %v1516 = vunpack.c.l.bf16 %v1464
        %v1517 = vunpack.c.h.bf16 %v1463
        %v1518 = vunpack.c.h.bf16 %v1464
        %v1519 = vunpack.c.l.bf16 %v1465
        %v1520 = vunpack.c.l.bf16 %v1466
        %v1521 = vunpack.c.h.bf16 %v1465
        %v1522 = vunpack.c.h.bf16 %v1466
        %v1523 = vunpack.c.l.bf16 %v1467
        %v1524 = vunpack.c.l.bf16 %v1468
        %v1525 = vunpack.c.h.bf16 %v1467
        %v1526 = vunpack.c.h.bf16 %v1468
        %v1527 = vunpack.c.l.bf16 %v1469
        %v1528 = vunpack.c.l.bf16 %v1470
        %v1529 = vunpack.c.h.bf16 %v1469
        %v1530 = vunpack.c.h.bf16 %v1470
        %v1531 = vunpack.c.l.bf16 %v1471
        %v1532 = vunpack.c.l.bf16 %v1472
        %v1533 = vunpack.c.h.bf16 %v1471
        %v1534 = vunpack.c.h.bf16 %v1472
        %v1535 = vunpack.c.l.bf16 %v1473
        %v1536 = vunpack.c.l.bf16 %v1474
        %v1537 = vunpack.c.h.bf16 %v1473
        %v1538 = vunpack.c.h.bf16 %v1474
        %v1539 = vld [vmem:[%s5] sm:$0x3]
        %v1541 = vlaneseq
        %v1542 = vshrl.u32 %v1541, 7
        %v1543 = vsub.s32 0, %v1542
        %v1544 = vrot.slane %v1539, %v1543
        %v1545 = vlaneseq
        %v1546 = vshrl.u32 %v1545, 7
        %v1547 = vsub.s32 1, %v1546
        %v1548 = vrot.slane %v1539, %v1547
        %v1551 = vmul.f32 %v1475, %v1544
        %v1552 = vmul.f32 %v1476, %v1548
        %v1553 = vmul.f32 %v1477, %v1544
        %v1554 = vmul.f32 %v1478, %v1548
        %v1555 = vmul.f32 %v1479, %v1544
        %v1556 = vmul.f32 %v1480, %v1548
        %v1557 = vmul.f32 %v1481, %v1544
        %v1558 = vmul.f32 %v1482, %v1548
        %v1559 = vmul.f32 %v1483, %v1544
        %v1560 = vmul.f32 %v1484, %v1548
        %v1561 = vmul.f32 %v1485, %v1544
        %v1562 = vmul.f32 %v1486, %v1548
        %v1563 = vmul.f32 %v1487, %v1544
        %v1564 = vmul.f32 %v1488, %v1548
        %v1565 = vmul.f32 %v1489, %v1544
        %v1566 = vmul.f32 %v1490, %v1548
        %v1567 = vmul.f32 %v1491, %v1544
        %v1568 = vmul.f32 %v1492, %v1548
        %v1569 = vmul.f32 %v1493, %v1544
        %v1570 = vmul.f32 %v1494, %v1548
        %v1571 = vmul.f32 %v1495, %v1544
        %v1572 = vmul.f32 %v1496, %v1548
        %v1573 = vmul.f32 %v1497, %v1544
        %v1574 = vmul.f32 %v1498, %v1548
        %v1575 = vmul.f32 %v1499, %v1544
        %v1576 = vmul.f32 %v1500, %v1548
        %v1577 = vmul.f32 %v1501, %v1544
        %v1578 = vmul.f32 %v1502, %v1548
        %v1579 = vmul.f32 %v1503, %v1544
        %v1580 = vmul.f32 %v1504, %v1548
        %v1581 = vmul.f32 %v1505, %v1544
        %v1582 = vmul.f32 %v1506, %v1548
        %v1583 = vmul.f32 %v1507, %v1544
        %v1584 = vmul.f32 %v1508, %v1548
        %v1585 = vmul.f32 %v1509, %v1544
        %v1586 = vmul.f32 %v1510, %v1548
        %v1587 = vmul.f32 %v1511, %v1544
        %v1588 = vmul.f32 %v1512, %v1548
        %v1589 = vmul.f32 %v1513, %v1544
        %v1590 = vmul.f32 %v1514, %v1548
        %v1591 = vmul.f32 %v1515, %v1544
        %v1592 = vmul.f32 %v1516, %v1548
        %v1593 = vmul.f32 %v1517, %v1544
        %v1594 = vmul.f32 %v1518, %v1548
        %v1595 = vmul.f32 %v1519, %v1544
        %v1596 = vmul.f32 %v1520, %v1548
        %v1597 = vmul.f32 %v1521, %v1544
        %v1598 = vmul.f32 %v1522, %v1548
        %v1599 = vmul.f32 %v1523, %v1544
        %v1600 = vmul.f32 %v1524, %v1548
        %v1601 = vmul.f32 %v1525, %v1544
        %v1602 = vmul.f32 %v1526, %v1548
        %v1603 = vmul.f32 %v1527, %v1544
        %v1604 = vmul.f32 %v1528, %v1548
        %v1605 = vmul.f32 %v1529, %v1544
        %v1606 = vmul.f32 %v1530, %v1548
        %v1607 = vmul.f32 %v1531, %v1544
        %v1608 = vmul.f32 %v1532, %v1548
        %v1609 = vmul.f32 %v1533, %v1544
        %v1610 = vmul.f32 %v1534, %v1548
        %v1611 = vmul.f32 %v1535, %v1544
        %v1612 = vmul.f32 %v1536, %v1548
        %v1613 = vmul.f32 %v1537, %v1544
        %v1614 = vmul.f32 %v1538, %v1548
        %v1615 = vadd.f32 %v1551, %v1552
        %1616 = vadd.xlane.f32.xlu0 %v1615
        %v1617 = vpop.xlane.xlu0 %1616
        %v1618 = vadd.f32 %v1553, %v1554
        %1619 = vadd.xlane.f32.xlu0 %v1618
        %v1620 = vpop.xlane.xlu0 %1619
        %v1621 = vadd.f32 %v1555, %v1556
        %1622 = vadd.xlane.f32.xlu0 %v1621
        %v1623 = vpop.xlane.xlu0 %1622
        %v1624 = vadd.f32 %v1557, %v1558
        %1625 = vadd.xlane.f32.xlu0 %v1624
        %v1626 = vpop.xlane.xlu0 %1625
        %v1627 = vadd.f32 %v1559, %v1560
        %1628 = vadd.xlane.f32.xlu0 %v1627
        %v1629 = vpop.xlane.xlu0 %1628
        %v1630 = vadd.f32 %v1561, %v1562
        %1631 = vadd.xlane.f32.xlu0 %v1630
        %v1632 = vpop.xlane.xlu0 %1631
        %v1633 = vadd.f32 %v1563, %v1564
        %1634 = vadd.xlane.f32.xlu0 %v1633
        %v1635 = vpop.xlane.xlu0 %1634
        %v1636 = vadd.f32 %v1565, %v1566
        %1637 = vadd.xlane.f32.xlu0 %v1636
        %v1638 = vpop.xlane.xlu0 %1637
        %v1639 = vadd.f32 %v1567, %v1568
        %1640 = vadd.xlane.f32.xlu0 %v1639
        %v1641 = vpop.xlane.xlu0 %1640
        %v1642 = vadd.f32 %v1569, %v1570
        %1643 = vadd.xlane.f32.xlu0 %v1642
        %v1644 = vpop.xlane.xlu0 %1643
        %v1645 = vadd.f32 %v1571, %v1572
        %1646 = vadd.xlane.f32.xlu0 %v1645
        %v1647 = vpop.xlane.xlu0 %1646
        %v1648 = vadd.f32 %v1573, %v1574
        %1649 = vadd.xlane.f32.xlu0 %v1648
        %v1650 = vpop.xlane.xlu0 %1649
        %v1651 = vadd.f32 %v1575, %v1576
        %1652 = vadd.xlane.f32.xlu0 %v1651
        %v1653 = vpop.xlane.xlu0 %1652
        %v1654 = vadd.f32 %v1577, %v1578
        %1655 = vadd.xlane.f32.xlu0 %v1654
        %v1656 = vpop.xlane.xlu0 %1655
        %v1657 = vadd.f32 %v1579, %v1580
        %1658 = vadd.xlane.f32.xlu0 %v1657
        %v1659 = vpop.xlane.xlu0 %1658
        %v1660 = vadd.f32 %v1581, %v1582
        %1661 = vadd.xlane.f32.xlu0 %v1660
        %v1662 = vpop.xlane.xlu0 %1661
        %v1663 = vadd.f32 %v1583, %v1584
        %1664 = vadd.xlane.f32.xlu0 %v1663
        %v1665 = vpop.xlane.xlu0 %1664
        %v1666 = vadd.f32 %v1585, %v1586
        %1667 = vadd.xlane.f32.xlu0 %v1666
        %v1668 = vpop.xlane.xlu0 %1667
        %v1669 = vadd.f32 %v1587, %v1588
        %1670 = vadd.xlane.f32.xlu0 %v1669
        %v1671 = vpop.xlane.xlu0 %1670
        %v1672 = vadd.f32 %v1589, %v1590
        %1673 = vadd.xlane.f32.xlu0 %v1672
        %v1674 = vpop.xlane.xlu0 %1673
        %v1675 = vadd.f32 %v1591, %v1592
        %1676 = vadd.xlane.f32.xlu0 %v1675
        %v1677 = vpop.xlane.xlu0 %1676
        %v1678 = vadd.f32 %v1593, %v1594
        %1679 = vadd.xlane.f32.xlu0 %v1678
        %v1680 = vpop.xlane.xlu0 %1679
        %v1681 = vadd.f32 %v1595, %v1596
        %1682 = vadd.xlane.f32.xlu0 %v1681
        %v1683 = vpop.xlane.xlu0 %1682
        %v1684 = vadd.f32 %v1597, %v1598
        %1685 = vadd.xlane.f32.xlu0 %v1684
        %v1686 = vpop.xlane.xlu0 %1685
        %v1687 = vadd.f32 %v1599, %v1600
        %1688 = vadd.xlane.f32.xlu0 %v1687
        %v1689 = vpop.xlane.xlu0 %1688
        %v1690 = vadd.f32 %v1601, %v1602
        %1691 = vadd.xlane.f32.xlu0 %v1690
        %v1692 = vpop.xlane.xlu0 %1691
        %v1693 = vadd.f32 %v1603, %v1604
        %1694 = vadd.xlane.f32.xlu0 %v1693
        %v1695 = vpop.xlane.xlu0 %1694
        %v1696 = vadd.f32 %v1605, %v1606
        %1697 = vadd.xlane.f32.xlu0 %v1696
        %v1698 = vpop.xlane.xlu0 %1697
        %v1699 = vadd.f32 %v1607, %v1608
        %1700 = vadd.xlane.f32.xlu0 %v1699
        %v1701 = vpop.xlane.xlu0 %1700
        %v1702 = vadd.f32 %v1609, %v1610
        %1703 = vadd.xlane.f32.xlu0 %v1702
        %v1704 = vpop.xlane.xlu0 %1703
        %v1705 = vadd.f32 %v1611, %v1612
        %1706 = vadd.xlane.f32.xlu0 %v1705
        %v1707 = vpop.xlane.xlu0 %1706
        %v1708 = vadd.f32 %v1613, %v1614
        %1709 = vadd.xlane.f32.xlu0 %v1708
        %v1710 = vpop.xlane.xlu0 %1709
        %v1711 = vld [vmem:[#allocation2] sm:$0x1]
        %v1713 = vlaneseq
        %v1714 = vshrl.u32 %v1713, 7
        %v1715 = vsub.s32 0, %v1714
        %v1716 = vrot.slane %v1711, %v1715
        %v1718 = vadd.f32 %v1617, %v1716
        %v1719 = vadd.f32 %v1620, %v1716
        %v1720 = vadd.f32 %v1623, %v1716
        %v1721 = vadd.f32 %v1626, %v1716
        %v1722 = vadd.f32 %v1629, %v1716
        %v1723 = vadd.f32 %v1632, %v1716
        %v1724 = vadd.f32 %v1635, %v1716
        %v1725 = vadd.f32 %v1638, %v1716
        %v1726 = vadd.f32 %v1641, %v1716
        %v1727 = vadd.f32 %v1644, %v1716
        %v1728 = vadd.f32 %v1647, %v1716
        %v1729 = vadd.f32 %v1650, %v1716
        %v1730 = vadd.f32 %v1653, %v1716
        %v1731 = vadd.f32 %v1656, %v1716
        %v1732 = vadd.f32 %v1659, %v1716
        %v1733 = vadd.f32 %v1662, %v1716
        %v1734 = vadd.f32 %v1665, %v1716
        %v1735 = vadd.f32 %v1668, %v1716
        %v1736 = vadd.f32 %v1671, %v1716
        %v1737 = vadd.f32 %v1674, %v1716
        %v1738 = vadd.f32 %v1677, %v1716
        %v1739 = vadd.f32 %v1680, %v1716
        %v1740 = vadd.f32 %v1683, %v1716
        %v1741 = vadd.f32 %v1686, %v1716
        %v1742 = vadd.f32 %v1689, %v1716
        %v1743 = vadd.f32 %v1692, %v1716
        %v1744 = vadd.f32 %v1695, %v1716
        %v1745 = vadd.f32 %v1698, %v1716
        %v1746 = vadd.f32 %v1701, %v1716
        %v1747 = vadd.f32 %v1704, %v1716
        %v1748 = vadd.f32 %v1707, %v1716
        %v1749 = vadd.f32 %v1710, %v1716
        %vm1750 = vcmask 7168
        %1751 = vst.msk [vmem:[%s282] sm:$0xff] %vm1750, %v1718
        %1752 = vst.msk [vmem:[%s282 + $0x8] sm:$0xff] %vm1750, %v1719
        %1753 = vst.msk [vmem:[%s282 + $0x10] sm:$0xff] %vm1750, %v1720
        %1754 = vst.msk [vmem:[%s282 + $0x18] sm:$0xff] %vm1750, %v1721
        %1755 = vst.msk [vmem:[%s282 + $0x20] sm:$0xff] %vm1750, %v1722
        %1756 = vst.msk [vmem:[%s282 + $0x28] sm:$0xff] %vm1750, %v1723
        %1757 = vst.msk [vmem:[%s282 + $0x30] sm:$0xff] %vm1750, %v1724
        %1758 = vst.msk [vmem:[%s282 + $0x38] sm:$0xff] %vm1750, %v1725
        %1759 = vst.msk [vmem:[%s282 + $0x40] sm:$0xff] %vm1750, %v1726
        %1760 = vst.msk [vmem:[%s282 + $0x48] sm:$0xff] %vm1750, %v1727
        %1761 = vst.msk [vmem:[%s282 + $0x50] sm:$0xff] %vm1750, %v1728
        %1762 = vst.msk [vmem:[%s282 + $0x58] sm:$0xff] %vm1750, %v1729
        %1763 = vst.msk [vmem:[%s282 + $0x60] sm:$0xff] %vm1750, %v1730
        %1764 = vst.msk [vmem:[%s282 + $0x68] sm:$0xff] %vm1750, %v1731
        %1765 = vst.msk [vmem:[%s282 + $0x70] sm:$0xff] %vm1750, %v1732
        %1766 = vst.msk [vmem:[%s282 + $0x78] sm:$0xff] %vm1750, %v1733
        %1767 = vst.msk [vmem:[%s282 + $0x80] sm:$0xff] %vm1750, %v1734
        %1768 = vst.msk [vmem:[%s282 + $0x88] sm:$0xff] %vm1750, %v1735
        %1769 = vst.msk [vmem:[%s282 + $0x90] sm:$0xff] %vm1750, %v1736
        %1770 = vst.msk [vmem:[%s282 + $0x98] sm:$0xff] %vm1750, %v1737
        %1771 = vst.msk [vmem:[%s282 + $0xa0] sm:$0xff] %vm1750, %v1738
        %1772 = vst.msk [vmem:[%s282 + $0xa8] sm:$0xff] %vm1750, %v1739
        %1773 = vst.msk [vmem:[%s282 + $0xb0] sm:$0xff] %vm1750, %v1740
        %1774 = vst.msk [vmem:[%s282 + $0xb8] sm:$0xff] %vm1750, %v1741
        %1775 = vst.msk [vmem:[%s282 + $0xc0] sm:$0xff] %vm1750, %v1742
        %1776 = vst.msk [vmem:[%s282 + $0xc8] sm:$0xff] %vm1750, %v1743
        %1777 = vst.msk [vmem:[%s282 + $0xd0] sm:$0xff] %vm1750, %v1744
        %1778 = vst.msk [vmem:[%s282 + $0xd8] sm:$0xff] %vm1750, %v1745
        %1779 = vst.msk [vmem:[%s282 + $0xe0] sm:$0xff] %vm1750, %v1746
        %1780 = vst.msk [vmem:[%s282 + $0xe8] sm:$0xff] %vm1750, %v1747
        %1781 = vst.msk [vmem:[%s282 + $0xf0] sm:$0xff] %vm1750, %v1748
        %1782 = vst.msk [vmem:[%s282 + $0xf8] sm:$0xff] %vm1750, %v1749
        %s1783 = sand.u32 %s180, 1
        %s1784 = sand.u32 %s180, 1
        %s1785 = smul.addr %s1784, 256
        %s1786 = scalar_lea.vmem [#allocation3], %s1785
        // Predicated region
        $region49: #{tpu_custom_call.1} parent=47 // pred_check
          %p1787 = pneg %p190
        $region50: #{tpu_custom_call.1} parent=47 // pred_check_branch
          %1789 = sbr.rel (%p1787) target = $region52
        $region51: #{tpu_custom_call.1} parent=47 // pred_region
          %s1790 = smul.u32 32, %s20
          %s1791 = ssub.s32 38, %s1790
          %p1792 = scmp.lt.s32.totalorder %s1791, 32
          %s1793 = scalar_select %p1792, %s1791, 32
          %s1794 = smul.u32 128, %s1793
          %p1795 = scmp.ne.s32.totalorder 0, %s1794
          %s1796 = smul.addr %s1790, 8
          %s1797 = scalar_lea.vmem %s7, %s1796
          // Predicated region
          $region53: #{tpu_custom_call.1} parent=51 // pred_check
            %p1798 = pneg %p1795
          $region54: #{tpu_custom_call.1} parent=51 // pred_check_branch
            %1800 = sbr.rel (%p1798) target = $region56
          $region55: #{tpu_custom_call.1} parent=51 // pred_region
            // Predicated region
            $region57: #{tpu_custom_call.1} parent=55 // pred_check
              _
            $region58: #{tpu_custom_call.1} parent=55 // pred_check_branch
              %1802 = sbr.rel (0) target = $region60
            $region59: #{tpu_custom_call.1} parent=55 // pred_region
              // Predicated region
              $region79: #{tpu_custom_call.1} parent=59 // pred_check
                _
              $region80: #{tpu_custom_call.1} parent=59 // pred_check_branch
                %1914 = sbr.rel (0) target = $region82
              $region81: #{tpu_custom_call.1} parent=59 // pred_region
                %s1915 = sshrl.u32 %s1793, 5
                // While loop
                $region83: #{tpu_custom_call.1} parent=81 // loop_pre_header
                  _
                $region84: #{tpu_custom_call.1} parent=81 // loop_header
                  %s1917 = sphi 0, %s1919
                  %p1918 = scmp.ge.s32.totalorder %s1917, %s1915
                  %s1922 = sphi 0, %s1991
                  %s1923 = sphi %s1786, %s1994
                  %s1924 = sphi %s1797, %s1995
                $region85: #{tpu_custom_call.1} parent=81 // loop_header_branch
                  %1921 = sbr.rel (%p1918) target = $region89
                $region86: #{tpu_custom_call.1} parent=81 // loop_body
                  %v1925 = vld [vmem:[%s1923] sm:$0xff]
                  %1926 = vst [vmem:[%s1924] sm:$0xff] %v1925
                  %v1927 = vld [vmem:[%s1923 + $0x8] sm:$0xff]
                  %1928 = vst [vmem:[%s1924 + $0x8] sm:$0xff] %v1927
                  %v1929 = vld [vmem:[%s1923 + $0x10] sm:$0xff]
                  %1930 = vst [vmem:[%s1924 + $0x10] sm:$0xff] %v1929
                  %v1931 = vld [vmem:[%s1923 + $0x18] sm:$0xff]
                  %1932 = vst [vmem:[%s1924 + $0x18] sm:$0xff] %v1931
                  %v1933 = vld [vmem:[%s1923 + $0x20] sm:$0xff]
                  %1934 = vst [vmem:[%s1924 + $0x20] sm:$0xff] %v1933
                  %v1935 = vld [vmem:[%s1923 + $0x28] sm:$0xff]
                  %1936 = vst [vmem:[%s1924 + $0x28] sm:$0xff] %v1935
                  %v1937 = vld [vmem:[%s1923 + $0x30] sm:$0xff]
                  %1938 = vst [vmem:[%s1924 + $0x30] sm:$0xff] %v1937
                  %v1939 = vld [vmem:[%s1923 + $0x38] sm:$0xff]
                  %1940 = vst [vmem:[%s1924 + $0x38] sm:$0xff] %v1939
                  %v1941 = vld [vmem:[%s1923 + $0x40] sm:$0xff]
                  %1942 = vst [vmem:[%s1924 + $0x40] sm:$0xff] %v1941
                  %v1943 = vld [vmem:[%s1923 + $0x48] sm:$0xff]
                  %1944 = vst [vmem:[%s1924 + $0x48] sm:$0xff] %v1943
                  %v1945 = vld [vmem:[%s1923 + $0x50] sm:$0xff]
                  %1946 = vst [vmem:[%s1924 + $0x50] sm:$0xff] %v1945
                  %v1947 = vld [vmem:[%s1923 + $0x58] sm:$0xff]
                  %1948 = vst [vmem:[%s1924 + $0x58] sm:$0xff] %v1947
                  %v1949 = vld [vmem:[%s1923 + $0x60] sm:$0xff]
                  %1950 = vst [vmem:[%s1924 + $0x60] sm:$0xff] %v1949
                  %v1951 = vld [vmem:[%s1923 + $0x68] sm:$0xff]
                  %1952 = vst [vmem:[%s1924 + $0x68] sm:$0xff] %v1951
                  %v1953 = vld [vmem:[%s1923 + $0x70] sm:$0xff]
                  %1954 = vst [vmem:[%s1924 + $0x70] sm:$0xff] %v1953
                  %v1955 = vld [vmem:[%s1923 + $0x78] sm:$0xff]
                  %1956 = vst [vmem:[%s1924 + $0x78] sm:$0xff] %v1955
                  %v1957 = vld [vmem:[%s1923 + $0x80] sm:$0xff]
                  %1958 = vst [vmem:[%s1924 + $0x80] sm:$0xff] %v1957
                  %v1959 = vld [vmem:[%s1923 + $0x88] sm:$0xff]
                  %1960 = vst [vmem:[%s1924 + $0x88] sm:$0xff] %v1959
                  %v1961 = vld [vmem:[%s1923 + $0x90] sm:$0xff]
                  %1962 = vst [vmem:[%s1924 + $0x90] sm:$0xff] %v1961
                  %v1963 = vld [vmem:[%s1923 + $0x98] sm:$0xff]
                  %1964 = vst [vmem:[%s1924 + $0x98] sm:$0xff] %v1963
                  %v1965 = vld [vmem:[%s1923 + $0xa0] sm:$0xff]
                  %1966 = vst [vmem:[%s1924 + $0xa0] sm:$0xff] %v1965
                  %v1967 = vld [vmem:[%s1923 + $0xa8] sm:$0xff]
                  %1968 = vst [vmem:[%s1924 + $0xa8] sm:$0xff] %v1967
                  %v1969 = vld [vmem:[%s1923 + $0xb0] sm:$0xff]
                  %1970 = vst [vmem:[%s1924 + $0xb0] sm:$0xff] %v1969
                  %v1971 = vld [vmem:[%s1923 + $0xb8] sm:$0xff]
                  %1972 = vst [vmem:[%s1924 + $0xb8] sm:$0xff] %v1971
                  %v1973 = vld [vmem:[%s1923 + $0xc0] sm:$0xff]
                  %1974 = vst [vmem:[%s1924 + $0xc0] sm:$0xff] %v1973
                  %v1975 = vld [vmem:[%s1923 + $0xc8] sm:$0xff]
                  %1976 = vst [vmem:[%s1924 + $0xc8] sm:$0xff] %v1975
                  %v1977 = vld [vmem:[%s1923 + $0xd0] sm:$0xff]
                  %1978 = vst [vmem:[%s1924 + $0xd0] sm:$0xff] %v1977
                  %v1979 = vld [vmem:[%s1923 + $0xd8] sm:$0xff]
                  %1980 = vst [vmem:[%s1924 + $0xd8] sm:$0xff] %v1979
                  %v1981 = vld [vmem:[%s1923 + $0xe0] sm:$0xff]
                  %1982 = vst [vmem:[%s1924 + $0xe0] sm:$0xff] %v1981
                  %v1983 = vld [vmem:[%s1923 + $0xe8] sm:$0xff]
                  %1984 = vst [vmem:[%s1924 + $0xe8] sm:$0xff] %v1983
                  %v1985 = vld [vmem:[%s1923 + $0xf0] sm:$0xff]
                  %1986 = vst [vmem:[%s1924 + $0xf0] sm:$0xff] %v1985
                  %v1987 = vld [vmem:[%s1923 + $0xf8] sm:$0xff]
                  %1988 = vst [vmem:[%s1924 + $0xf8] sm:$0xff] %v1987
                  %s1989 = sadd.s32 1, %s1922
                  %p1990 = scmp.ge.s32.totalorder %s1989, %s1915
                  %s1991 = scalar_select %p1990, 0, %s1989
                  %s1992 = smul.u32 %s1991, 256
                  %s1993 = smul.u32 %s1991, 256
                  %s1994 = scalar_lea.vmem %s1786, %s1992 [#allocation3]
                  %s1995 = scalar_lea.vmem %s1797, %s1993
                $region87: #{tpu_custom_call.1} parent=81 // loop_footer
                  %s1919 = sadd.s32 %s1917, 1
                $region88: #{tpu_custom_call.1} parent=81 // loop_footer_branch
                  %1916 = sbr.rel target = $region84
                $region89: #{tpu_custom_call.1} parent=81 // loop_exit
                  _
                %s1996 = sshrl.u32 %s1793, 5
                %s1997 = sand.u32 %s1793, 31
                %s1998 = smul.u32 %s1996, 32
                %s1999 = smul.u32 8, %s1998
                %s2000 = scalar_lea.vmem %s1786, %s1999 [#allocation3]
                %s2001 = smul.u32 8, %s1998
                %s2002 = scalar_lea.vmem %s1797, %s2001
                // While loop
                $region90: #{tpu_custom_call.1} parent=81 // loop_pre_header
                  _
                $region91: #{tpu_custom_call.1} parent=81 // loop_header
                  %s2004 = sphi 0, %s2006
                  %p2005 = scmp.ge.s32.totalorder %s2004, %s1997
                  %s2009 = sphi 0, %s2016
                  %s2010 = sphi %s2000, %s2019
                  %s2011 = sphi %s2002, %s2020
                $region92: #{tpu_custom_call.1} parent=81 // loop_header_branch
                  %2008 = sbr.rel (%p2005) target = $region96
                $region93: #{tpu_custom_call.1} parent=81 // loop_body
                  %v2012 = vld [vmem:[%s2010] sm:$0xff]
                  %2013 = vst [vmem:[%s2011] sm:$0xff] %v2012
                  %s2014 = sadd.s32 1, %s2009
                  %p2015 = scmp.ge.s32.totalorder %s2014, %s1997
                  %s2016 = scalar_select %p2015, 0, %s2014
                  %s2017 = smul.u32 %s2016, 8
                  %s2018 = smul.u32 %s2016, 8
                  %s2019 = scalar_lea.vmem %s2000, %s2017 [#allocation3]
                  %s2020 = scalar_lea.vmem %s2002, %s2018
                $region94: #{tpu_custom_call.1} parent=81 // loop_footer
                  %s2006 = sadd.s32 %s2004, 1
                $region95: #{tpu_custom_call.1} parent=81 // loop_footer_branch
                  %2003 = sbr.rel target = $region91
                $region96: #{tpu_custom_call.1} parent=81 // loop_exit
                  _
              $region82: #{tpu_custom_call.1} parent=59 // pred_fallthru
                _
              // Predicated region
              $region97: #{tpu_custom_call.1} parent=59 // pred_check
                _
              $region98: #{tpu_custom_call.1} parent=59 // pred_check_branch
                %2022 = sbr.rel target = $region100
              $region99: #{tpu_custom_call.1} parent=59 // pred_region
                _
              $region100: #{tpu_custom_call.1} parent=59 // pred_fallthru
                _
            $region60: #{tpu_custom_call.1} parent=55 // pred_fallthru
              _
            // Predicated region
            $region61: #{tpu_custom_call.1} parent=55 // pred_check
              _
            $region62: #{tpu_custom_call.1} parent=55 // pred_check_branch
              %1804 = sbr.rel target = $region64
            $region63: #{tpu_custom_call.1} parent=55 // pred_region
              %s1806 = ssub.s32 256, 1
              %s1807 = sshrl.u32 %s1793, 5
              // While loop
              $region65: #{tpu_custom_call.1} parent=63 // loop_pre_header
                _
              $region66: #{tpu_custom_call.1} parent=63 // loop_header
                %s1809 = sphi 0, %s1811
                %p1810 = scmp.ge.s32.totalorder %s1809, %s1807
                %s1814 = sphi 0, %s1883
                %s1815 = sphi %s1786, %s1886
                %s1816 = sphi %s1797, %s1887
              $region67: #{tpu_custom_call.1} parent=63 // loop_header_branch
                %1813 = sbr.rel (%p1810) target = $region71
              $region68: #{tpu_custom_call.1} parent=63 // loop_body
                %v1817 = vld [vmem:[%s1815] sm:%s1806]
                %1818 = vst [vmem:[%s1816] sm:%s1806] %v1817
                %v1819 = vld [vmem:[%s1815 + $0x8] sm:%s1806]
                %1820 = vst [vmem:[%s1816 + $0x8] sm:%s1806] %v1819
                %v1821 = vld [vmem:[%s1815 + $0x10] sm:%s1806]
                %1822 = vst [vmem:[%s1816 + $0x10] sm:%s1806] %v1821
                %v1823 = vld [vmem:[%s1815 + $0x18] sm:%s1806]
                %1824 = vst [vmem:[%s1816 + $0x18] sm:%s1806] %v1823
                %v1825 = vld [vmem:[%s1815 + $0x20] sm:%s1806]
                %1826 = vst [vmem:[%s1816 + $0x20] sm:%s1806] %v1825
                %v1827 = vld [vmem:[%s1815 + $0x28] sm:%s1806]
                %1828 = vst [vmem:[%s1816 + $0x28] sm:%s1806] %v1827
                %v1829 = vld [vmem:[%s1815 + $0x30] sm:%s1806]
                %1830 = vst [vmem:[%s1816 + $0x30] sm:%s1806] %v1829
                %v1831 = vld [vmem:[%s1815 + $0x38] sm:%s1806]
                %1832 = vst [vmem:[%s1816 + $0x38] sm:%s1806] %v1831
                %v1833 = vld [vmem:[%s1815 + $0x40] sm:%s1806]
                %1834 = vst [vmem:[%s1816 + $0x40] sm:%s1806] %v1833
                %v1835 = vld [vmem:[%s1815 + $0x48] sm:%s1806]
                %1836 = vst [vmem:[%s1816 + $0x48] sm:%s1806] %v1835
                %v1837 = vld [vmem:[%s1815 + $0x50] sm:%s1806]
                %1838 = vst [vmem:[%s1816 + $0x50] sm:%s1806] %v1837
                %v1839 = vld [vmem:[%s1815 + $0x58] sm:%s1806]
                %1840 = vst [vmem:[%s1816 + $0x58] sm:%s1806] %v1839
                %v1841 = vld [vmem:[%s1815 + $0x60] sm:%s1806]
                %1842 = vst [vmem:[%s1816 + $0x60] sm:%s1806] %v1841
                %v1843 = vld [vmem:[%s1815 + $0x68] sm:%s1806]
                %1844 = vst [vmem:[%s1816 + $0x68] sm:%s1806] %v1843
                %v1845 = vld [vmem:[%s1815 + $0x70] sm:%s1806]
                %1846 = vst [vmem:[%s1816 + $0x70] sm:%s1806] %v1845
                %v1847 = vld [vmem:[%s1815 + $0x78] sm:%s1806]
                %1848 = vst [vmem:[%s1816 + $0x78] sm:%s1806] %v1847
                %v1849 = vld [vmem:[%s1815 + $0x80] sm:%s1806]
                %1850 = vst [vmem:[%s1816 + $0x80] sm:%s1806] %v1849
                %v1851 = vld [vmem:[%s1815 + $0x88] sm:%s1806]
                %1852 = vst [vmem:[%s1816 + $0x88] sm:%s1806] %v1851
                %v1853 = vld [vmem:[%s1815 + $0x90] sm:%s1806]
                %1854 = vst [vmem:[%s1816 + $0x90] sm:%s1806] %v1853
                %v1855 = vld [vmem:[%s1815 + $0x98] sm:%s1806]
                %1856 = vst [vmem:[%s1816 + $0x98] sm:%s1806] %v1855
                %v1857 = vld [vmem:[%s1815 + $0xa0] sm:%s1806]
                %1858 = vst [vmem:[%s1816 + $0xa0] sm:%s1806] %v1857
                %v1859 = vld [vmem:[%s1815 + $0xa8] sm:%s1806]
                %1860 = vst [vmem:[%s1816 + $0xa8] sm:%s1806] %v1859
                %v1861 = vld [vmem:[%s1815 + $0xb0] sm:%s1806]
                %1862 = vst [vmem:[%s1816 + $0xb0] sm:%s1806] %v1861
                %v1863 = vld [vmem:[%s1815 + $0xb8] sm:%s1806]
                %1864 = vst [vmem:[%s1816 + $0xb8] sm:%s1806] %v1863
                %v1865 = vld [vmem:[%s1815 + $0xc0] sm:%s1806]
                %1866 = vst [vmem:[%s1816 + $0xc0] sm:%s1806] %v1865
                %v1867 = vld [vmem:[%s1815 + $0xc8] sm:%s1806]
                %1868 = vst [vmem:[%s1816 + $0xc8] sm:%s1806] %v1867
                %v1869 = vld [vmem:[%s1815 + $0xd0] sm:%s1806]
                %1870 = vst [vmem:[%s1816 + $0xd0] sm:%s1806] %v1869
                %v1871 = vld [vmem:[%s1815 + $0xd8] sm:%s1806]
                %1872 = vst [vmem:[%s1816 + $0xd8] sm:%s1806] %v1871
                %v1873 = vld [vmem:[%s1815 + $0xe0] sm:%s1806]
                %1874 = vst [vmem:[%s1816 + $0xe0] sm:%s1806] %v1873
                %v1875 = vld [vmem:[%s1815 + $0xe8] sm:%s1806]
                %1876 = vst [vmem:[%s1816 + $0xe8] sm:%s1806] %v1875
                %v1877 = vld [vmem:[%s1815 + $0xf0] sm:%s1806]
                %1878 = vst [vmem:[%s1816 + $0xf0] sm:%s1806] %v1877
                %v1879 = vld [vmem:[%s1815 + $0xf8] sm:%s1806]
                %1880 = vst [vmem:[%s1816 + $0xf8] sm:%s1806] %v1879
                %s1881 = sadd.s32 1, %s1814
                %p1882 = scmp.ge.s32.totalorder %s1881, %s1807
                %s1883 = scalar_select %p1882, 0, %s1881
                %s1884 = smul.u32 %s1883, 256
                %s1885 = smul.u32 %s1883, 256
                %s1886 = scalar_lea.vmem %s1786, %s1884 [#allocation3]
                %s1887 = scalar_lea.vmem %s1797, %s1885
              $region69: #{tpu_custom_call.1} parent=63 // loop_footer
                %s1811 = sadd.s32 %s1809, 1
              $region70: #{tpu_custom_call.1} parent=63 // loop_footer_branch
                %1808 = sbr.rel target = $region66
              $region71: #{tpu_custom_call.1} parent=63 // loop_exit
                _
              %s1888 = sshrl.u32 %s1793, 5
              %s1889 = sand.u32 %s1793, 31
              %s1890 = smul.u32 %s1888, 32
              %s1891 = smul.u32 8, %s1890
              %s1892 = scalar_lea.vmem %s1786, %s1891 [#allocation3]
              %s1893 = smul.u32 8, %s1890
              %s1894 = scalar_lea.vmem %s1797, %s1893
              // While loop
              $region72: #{tpu_custom_call.1} parent=63 // loop_pre_header
                _
              $region73: #{tpu_custom_call.1} parent=63 // loop_header
                %s1896 = sphi 0, %s1898
                %p1897 = scmp.ge.s32.totalorder %s1896, %s1889
                %s1901 = sphi 0, %s1908
                %s1902 = sphi %s1892, %s1911
                %s1903 = sphi %s1894, %s1912
              $region74: #{tpu_custom_call.1} parent=63 // loop_header_branch
                %1900 = sbr.rel (%p1897) target = $region78
              $region75: #{tpu_custom_call.1} parent=63 // loop_body
                %v1904 = vld [vmem:[%s1902] sm:%s1806]
                %1905 = vst [vmem:[%s1903] sm:%s1806] %v1904
                %s1906 = sadd.s32 1, %s1901
                %p1907 = scmp.ge.s32.totalorder %s1906, %s1889
                %s1908 = scalar_select %p1907, 0, %s1906
                %s1909 = smul.u32 %s1908, 8
                %s1910 = smul.u32 %s1908, 8
                %s1911 = scalar_lea.vmem %s1892, %s1909 [#allocation3]
                %s1912 = scalar_lea.vmem %s1894, %s1910
              $region76: #{tpu_custom_call.1} parent=63 // loop_footer
                %s1898 = sadd.s32 %s1896, 1
              $region77: #{tpu_custom_call.1} parent=63 // loop_footer_branch
                %1895 = sbr.rel target = $region73
              $region78: #{tpu_custom_call.1} parent=63 // loop_exit
                _
            $region64: #{tpu_custom_call.1} parent=55 // pred_fallthru
              _
          $region56: #{tpu_custom_call.1} parent=51 // pred_fallthru
            _
          %2023 = vnop
        $region52: #{tpu_custom_call.1} parent=47 // pred_fallthru
          _
      $region48: #{tpu_custom_call.1} parent=5 // pred_fallthru
        _
      %p2024 = scmp.le.s32.totalorder 2, %s15
      // Predicated region
      $region101: #{tpu_custom_call.1} parent=5 // pred_check
        %p2025 = pneg %p2024
      $region102: #{tpu_custom_call.1} parent=5 // pred_check_branch
        %2027 = sbr.rel (%p2025) target = $region104
      $region103: #{tpu_custom_call.1} parent=5 // pred_region
        %s2028 = ssub.s32 %s15, 2
        // Predicated region
        $region105: #{tpu_custom_call.1} parent=103 // pred_check
          %p2029 = pneg %p196
        $region106: #{tpu_custom_call.1} parent=103 // pred_check_branch
          %2031 = sbr.rel (%p2029) target = $region108
        $region107: #{tpu_custom_call.1} parent=103 // pred_region
          %s2032 = sand.u32 %s181, 1
          %s2033 = sand.u32 %s181, 1
          %s2034 = smul.addr %s2033, 256
          %s2035 = scalar_lea.vmem [#allocation3], %s2034
        $region108: #{tpu_custom_call.1} parent=103 // pred_fallthru
          _
      $region104: #{tpu_custom_call.1} parent=5 // pred_fallthru
        _
    $region6: #{tpu_custom_call.1} parent=1 // loop_footer
      %s19 = sadd.s32 1, %s15
    $region7: #{tpu_custom_call.1} parent=1 // loop_footer_branch
      %14 = sbr.rel target = $region3
    $region8: #{tpu_custom_call.1} parent=1 // loop_exit
      _

</llo_original>
